<compile_context>
chip_gen: v5e
topology: v5e:2x2
jax: 0.10.0
libtpu: 0.0.40
codegen_flags: <defaults>
</compile_context>

<pallas_src>
import functools

import numpy as np

import jax
import jax.numpy as jnp
from jax import lax
from jax.experimental import pallas as pl
from jax.experimental.pallas import tpu as pltpu


_LANE_TARGET = 512            # target lane width when packing channels (128..512)
_BLOCK_BYTE_TARGET = 512 * 1024   # ~0.5 MiB per input block -> ~5 MiB resident, fits all gens
_MAX_T_TILE = 256


def _pick_group(B, L):
    """Pack G channels side-by-side on the lane axis so the lane dim is dense."""
    if L >= 128:
        return 1
    best = 1
    for cand in range(1, B + 1):
        if B % cand:
            continue
        if cand * L > _LANE_TARGET:
            break
        best = cand
        if cand * L >= 128:          # smallest group reaching a full vreg lane width
            return cand
    return best


def _pick_r_tile(R):
    if R <= 8:
        return R                      # full-dim block (no sublane-multiple constraint)
    half = (R // 2 + 7) // 8 * 8      # ~half of R, multiple of 8 -> >=2 parallel blocks
    return max(8, min(64, half))


def _make_kernel(t_tile, L, reverse, unroll):
    def kernel(x_ref, g1_ref, g2_ref, g3_ref, h_ref, prev_ref):
        # Reset the cross-tile carry at the start of every scan (first T block).
        @pl.when(pl.program_id(1) == 0)
        def _init():
            prev_ref[...] = jnp.zeros_like(prev_ref)

        shape2d = prev_ref.shape
        gl = shape2d[-1]
        # lateral index within each packed channel; hoisted out of the scan loop
        lat = lax.broadcasted_iota(jnp.int32, shape2d, 1) % L
        mask_m1 = lat > 0            # lateral-1 neighbour exists
        mask_p1 = lat < (L - 1)      # lateral+1 neighbour exists

        def body(s, prev):
            t = (t_tile - 1 - s) if reverse else s
            x = x_ref[t]
            g1 = g1_ref[t]
            g2 = g2_ref[t]
            g3 = g3_ref[t]
            pm1 = jnp.where(mask_m1, pltpu.roll(prev, 1, 1), 0.0)       # H at lateral-1
            pp1 = jnp.where(mask_p1, pltpu.roll(prev, gl - 1, 1), 0.0)  # H at lateral+1
            h = (1.0 - g1 - g2 - g3) * x + g1 * pm1 + g2 * prev + g3 * pp1
            h_ref[t] = h
            return h

        prev_ref[...] = lax.fori_loop(0, t_tile, body, prev_ref[...], unroll=unroll)

    return kernel


@functools.partial(jax.jit, static_argnames=("horizontal", "reverse"))
def gate_recurrent_2d_noind(X, G1, G2, G3, *, horizontal, reverse):
    """Forward pass of GateRecurrent2dnoind. Inputs/outputs are NCHW float32."""
    X, G1, G2, G3 = (a.astype(jnp.float32) for a in (X, G1, G2, G3))
    N, C, H, W = X.shape
    B = N * C

    if horizontal:
        T, L = W, H
        perm_in, perm_out = (3, 0, 1, 2), (1, 2, 3, 0)   # (W,N,C,H) <-> (N,C,H,W)
    else:
        T, L = H, W
        perm_in, perm_out = (2, 0, 1, 3), (1, 2, 0, 3)   # (H,N,C,W) <-> (N,C,H,W)

    G = _pick_group(B, L)
    R = B // G
    GL = G * L

    r_tile = _pick_r_tile(R)
    r_pad = -(-R // r_tile) * r_tile
    slab_bytes = r_tile * GL * 4
    t_tile = int(max(1, min(T, _MAX_T_TILE, _BLOCK_BYTE_TARGET // slab_bytes)))
    t_pad = -(-T // t_tile) * t_tile
    unroll = True if t_tile <= 16 else 8

    def to_kernel(a):
        a = jnp.transpose(a, perm_in).reshape(T, R, GL)
        if t_pad != T or r_pad != R:
            a = jnp.pad(a, ((0, t_pad - T), (0, r_pad - R), (0, 0)))
        return a

    xs = [to_kernel(a) for a in (X, G1, G2, G3)]

    num_r = r_pad // r_tile
    num_t = t_pad // t_tile
    if reverse:
        idx_map = lambda r, t: (num_t - 1 - t, r, 0)
    else:
        idx_map = lambda r, t: (t, r, 0)
    spec = pl.BlockSpec((t_tile, r_tile, GL), idx_map)

    h = pl.pallas_call(
        _make_kernel(t_tile, L, reverse, unroll),
        out_shape=jax.ShapeDtypeStruct((t_pad, r_pad, GL), jnp.float32),
        grid_spec=pltpu.PrefetchScalarGridSpec(
            num_scalar_prefetch=0,
            grid=(num_r, num_t),                       # T innermost (carry validity)
            in_specs=[spec, spec, spec, spec],
            out_specs=spec,
            scratch_shapes=[pltpu.VMEM((r_tile, GL), jnp.float32)],
        ),
        compiler_params=pltpu.CompilerParams(
            dimension_semantics=("parallel", "arbitrary"),
            vmem_limit_bytes=48 * 1024 * 1024,
        ),
    )(*xs)

    h = h[:T, :R].reshape(T, N, C, L)
    return jnp.transpose(h, perm_out)


def _reference(X, G1, G2, G3, horizontal, reverse):
    """Vectorized numpy reference matching the CUDA kernel exactly."""
    X, G1, G2, G3 = (np.asarray(a, dtype=np.float32) for a in (X, G1, G2, G3))
    N, C, H, W = X.shape
    Hout = np.zeros_like(X)
    if horizontal:
        steps = range(W - 1, -1, -1) if reverse else range(W)
        for w in steps:
            wp = w + 1 if reverse else w - 1
            prev = Hout[:, :, :, wp] if 0 <= wp < W else np.zeros((N, C, H), np.float32)
            pm1 = np.zeros_like(prev); pm1[:, :, 1:] = prev[:, :, :-1]
            pp1 = np.zeros_like(prev); pp1[:, :, :-1] = prev[:, :, 1:]
            g1, g2, g3 = G1[:, :, :, w], G2[:, :, :, w], G3[:, :, :, w]
            Hout[:, :, :, w] = ((1 - g1 - g2 - g3) * X[:, :, :, w]
                                + g1 * pm1 + g2 * prev + g3 * pp1)
    else:
        steps = range(H - 1, -1, -1) if reverse else range(H)
        for h in steps:
            hp = h + 1 if reverse else h - 1
            prev = Hout[:, :, hp, :] if 0 <= hp < H else np.zeros((N, C, W), np.float32)
            pm1 = np.zeros_like(prev); pm1[:, :, 1:] = prev[:, :, :-1]
            pp1 = np.zeros_like(prev); pp1[:, :, :-1] = prev[:, :, 1:]
            g1, g2, g3 = G1[:, :, h, :], G2[:, :, h, :], G3[:, :, h, :]
            Hout[:, :, h, :] = ((1 - g1 - g2 - g3) * X[:, :, h, :]
                                + g1 * pm1 + g2 * prev + g3 * pp1)
    return Hout


if __name__ == "__main__":
    key = jax.random.PRNGKey(0)

    def make_inputs(k, shape):
        kx, k1, k2, k3 = jax.random.split(k, 4)
        Xi = jax.random.normal(kx, shape, dtype=jnp.float32)
        # Gates: sigmoid-squashed, scaled so g1+g2+g3 <= 1 (typical SPN usage).
        G1i = jax.nn.sigmoid(jax.random.normal(k1, shape, dtype=jnp.float32)) / 3.0
        G2i = jax.nn.sigmoid(jax.random.normal(k2, shape, dtype=jnp.float32)) / 3.0
        G3i = jax.nn.sigmoid(jax.random.normal(k3, shape, dtype=jnp.float32)) / 3.0
        return Xi, G1i, G2i, G3i

    shapes = [
        (2, 4, 16, 16),     # primary test shape
        (1, 3, 10, 12),     # odd, non-tile-aligned dims (exercises padding / small GL)
        (2, 12, 256, 16),   # exercises R tiling (parallel B blocks) + long scan axis
    ]

    ok = True
    for si, shape in enumerate(shapes):
        key, sub = jax.random.split(key)
        X, G1, G2, G3 = make_inputs(sub, shape)
        for horizontal in (True, False):
            for reverse in (False, True):
                out = gate_recurrent_2d_noind(X, G1, G2, G3,
                                              horizontal=horizontal, reverse=reverse)
                out = jax.block_until_ready(out)
                ref = _reference(X, G1, G2, G3, horizontal, reverse)
                if not np.allclose(np.asarray(out), ref, atol=1e-4, rtol=1e-4):
                    ok = False
                    print(f"MISMATCH shape={shape} horizontal={horizontal} "
                          f"reverse={reverse} "
                          f"max_err={np.abs(np.asarray(out) - ref).max()}")

    if ok:
        print("KERNEL_OK")
</pallas_src>

<mosaic_0001>
module attributes {stable_mosaic.version = 11 : i64} {
  func.func @kernel(%arg0: i32, %arg1: i32, %arg2: memref<16x1x128xf32, #tpu.memory_space<vmem>>, %arg3: memref<16x1x128xf32, #tpu.memory_space<vmem>>, %arg4: memref<16x1x128xf32, #tpu.memory_space<vmem>>, %arg5: memref<16x1x128xf32, #tpu.memory_space<vmem>>, %arg6: memref<16x1x128xf32, #tpu.memory_space<vmem>>, %arg7: memref<1x128xf32, #tpu.memory_space<vmem>>) attributes {dimension_semantics = [#tpu.dimension_semantics<parallel>, #tpu.dimension_semantics<arbitrary>], iteration_bounds = array<i64: 1, 1>, scalar_prefetch = 0 : i64, scratch_operands = 1 : i64, tpu.core_type = #tpu.core_type<tc>, window_params = [{transform_indices = @transform_0, window_bounds = array<i64: 16, 1, 128>}, {transform_indices = @transform_1, window_bounds = array<i64: 16, 1, 128>}, {transform_indices = @transform_2, window_bounds = array<i64: 16, 1, 128>}, {transform_indices = @transform_3, window_bounds = array<i64: 16, 1, 128>}, {transform_indices = @transform_4, window_bounds = array<i64: 16, 1, 128>}]} {
    %c0_i32 = arith.constant 0 : i32
    %0 = arith.cmpi eq, %arg1, %c0_i32 : i32
    %1 = arith.extui %0 : i1 to i32
    %c0_i32_0 = arith.constant 0 : i32
    %2 = arith.cmpi ne, %1, %c0_i32_0 : i32
    scf.if %2 {
      %cst_251 = arith.constant 0.000000e+00 : f32
      %554 = vector.broadcast %cst_251 : f32 to vector<1x128xf32>
      %c0_252 = arith.constant 0 : index
      %c0_253 = arith.constant 0 : index
      %555 = vector.load %arg7[%c0_252, %c0_253] : memref<1x128xf32, #tpu.memory_space<vmem>>, vector<1x128xf32>
      tpu.vector_store %arg7[%c0_252, %c0_253], %554 {strides = array<i32>} : memref<1x128xf32, #tpu.memory_space<vmem>>, vector<1x128xf32>,
    } else {
    }
    %3 = tpu.iota {dimensions = array<i32: 1>} : vector<1x128xi32>
    %c16_i32 = arith.constant 16 : i32
    %c0_i32_1 = arith.constant 0 : i32
    %4 = arith.cmpi eq, %c16_i32, %c0_i32_1 : i32
    %c1_i32 = arith.constant 1 : i32
    %5 = arith.select %4, %c1_i32, %c16_i32 : i32
    %6 = vector.broadcast %5 : i32 to vector<1x128xi32>
    %7 = arith.remsi %3, %6 : vector<1x128xi32>
    %c0_i32_2 = arith.constant 0 : i32
    %8 = vector.broadcast %c0_i32_2 : i32 to vector<1x128xi32>
    %9 = arith.cmpi ne, %7, %8 : vector<1x128xi32>
    %c0_i32_3 = arith.constant 0 : i32
    %10 = vector.broadcast %c0_i32_3 : i32 to vector<1x128xi32>
    %11 = arith.cmpi slt, %7, %10 : vector<1x128xi32>
    %c0_i32_4 = arith.constant 0 : i32
    %12 = arith.cmpi slt, %5, %c0_i32_4 : i32
    %13 = vector.broadcast %12 : i1 to vector<1x128xi1>
    %14 = vector.broadcast %13 : vector<1x128xi1> to vector<1x128xi1>
    %15 = arith.xori %11, %14 : vector<1x128xi1>
    %16 = arith.andi %15, %9 : vector<1x128xi1>
    %17 = vector.broadcast %5 : i32 to vector<1x128xi32>
    %18 = arith.addi %7, %17 : vector<1x128xi32>
    %19 = arith.select %16, %18, %7 : vector<1x128xi1>, vector<1x128xi32>
    %c0_i32_5 = arith.constant 0 : i32
    %20 = vector.broadcast %c0_i32_5 : i32 to vector<1x128xi32>
    %21 = arith.cmpi sgt, %19, %20 : vector<1x128xi32>
    %c15_i32 = arith.constant 15 : i32
    %22 = vector.broadcast %c15_i32 : i32 to vector<1x128xi32>
    %23 = arith.cmpi slt, %19, %22 : vector<1x128xi32>
    %c0 = arith.constant 0 : index
    %c0_6 = arith.constant 0 : index
    %24 = vector.load %arg7[%c0, %c0_6] : memref<1x128xf32, #tpu.memory_space<vmem>>, vector<1x128xf32>
    %c0_i32_7 = arith.constant 0 : i32
    %25 = arith.index_cast %c0_i32_7 : i32 to index
    %c0_8 = arith.constant 0 : index
    %c0_9 = arith.constant 0 : index
    %26 = vector.load %arg2[%25, %c0_8, %c0_9] : memref<16x1x128xf32, #tpu.memory_space<vmem>>, vector<1x1x128xf32>
    %27 = vector.shape_cast %26 : vector<1x1x128xf32> to vector<1x128xf32>
    %28 = arith.index_cast %c0_i32_7 : i32 to index
    %c0_10 = arith.constant 0 : index
    %c0_11 = arith.constant 0 : index
    %29 = vector.load %arg3[%28, %c0_10, %c0_11] : memref<16x1x128xf32, #tpu.memory_space<vmem>>, vector<1x1x128xf32>
    %30 = vector.shape_cast %29 : vector<1x1x128xf32> to vector<1x128xf32>
    %31 = arith.index_cast %c0_i32_7 : i32 to index
    %c0_12 = arith.constant 0 : index
    %c0_13 = arith.constant 0 : index
    %32 = vector.load %arg4[%31, %c0_12, %c0_13] : memref<16x1x128xf32, #tpu.memory_space<vmem>>, vector<1x1x128xf32>
    %33 = vector.shape_cast %32 : vector<1x1x128xf32> to vector<1x128xf32>
    %34 = arith.index_cast %c0_i32_7 : i32 to index
    %c0_14 = arith.constant 0 : index
    %c0_15 = arith.constant 0 : index
    %35 = vector.load %arg5[%34, %c0_14, %c0_15] : memref<16x1x128xf32, #tpu.memory_space<vmem>>, vector<1x1x128xf32>
    %36 = vector.shape_cast %35 : vector<1x1x128xf32> to vector<1x128xf32>
    %c1_i32_16 = arith.constant 1 : i32
    %37 = tpu.dynamic_rotate %24 by %c1_i32_16 dim 1 : vector<1x128xf32>, i32 -> vector<1x128xf32>
    %cst = arith.constant 0.000000e+00 : f32
    %38 = vector.broadcast %cst : f32 to vector<1x128xf32>
    %39 = arith.select %21, %37, %38 : vector<1x128xi1>, vector<1x128xf32>
    %c127_i32 = arith.constant 127 : i32
    %40 = tpu.dynamic_rotate %24 by %c127_i32 dim 1 : vector<1x128xf32>, i32 -> vector<1x128xf32>
    %cst_17 = arith.constant 0.000000e+00 : f32
    %41 = vector.broadcast %cst_17 : f32 to vector<1x128xf32>
    %42 = arith.select %23, %40, %41 : vector<1x128xi1>, vector<1x128xf32>
    %cst_18 = arith.constant 1.000000e+00 : f32
    %43 = vector.broadcast %cst_18 : f32 to vector<1x128xf32>
    %44 = arith.subf %43, %30 : vector<1x128xf32>
    %45 = arith.subf %44, %33 : vector<1x128xf32>
    %46 = arith.subf %45, %36 : vector<1x128xf32>
    %47 = arith.mulf %46, %27 : vector<1x128xf32>
    %48 = arith.mulf %30, %39 : vector<1x128xf32>
    %49 = arith.addf %47, %48 : vector<1x128xf32>
    %50 = arith.mulf %33, %24 : vector<1x128xf32>
    %51 = arith.addf %49, %50 : vector<1x128xf32>
    %52 = arith.mulf %36, %42 : vector<1x128xf32>
    %53 = arith.addf %51, %52 : vector<1x128xf32>
    %54 = arith.index_cast %c0_i32_7 : i32 to index
    %c0_19 = arith.constant 0 : index
    %c0_20 = arith.constant 0 : index
    %55 = vector.load %arg6[%54, %c0_19, %c0_20] : memref<16x1x128xf32, #tpu.memory_space<vmem>>, vector<1x1x128xf32>
    %56 = vector.shape_cast %55 : vector<1x1x128xf32> to vector<1x128xf32>
    %57 = vector.shape_cast %53 : vector<1x128xf32> to vector<1x1x128xf32>
    tpu.vector_store %arg6[%54, %c0_19, %c0_20], %57 {strides = array<i32>} : memref<16x1x128xf32, #tpu.memory_space<vmem>>, vector<1x1x128xf32>,
    %c1_i32_21 = arith.constant 1 : i32
    %58 = arith.index_cast %c1_i32_21 : i32 to index
    %c0_22 = arith.constant 0 : index
    %c0_23 = arith.constant 0 : index
    %59 = vector.load %arg2[%58, %c0_22, %c0_23] : memref<16x1x128xf32, #tpu.memory_space<vmem>>, vector<1x1x128xf32>
    %60 = vector.shape_cast %59 : vector<1x1x128xf32> to vector<1x128xf32>
    %61 = arith.index_cast %c1_i32_21 : i32 to index
    %c0_24 = arith.constant 0 : index
    %c0_25 = arith.constant 0 : index
    %62 = vector.load %arg3[%61, %c0_24, %c0_25] : memref<16x1x128xf32, #tpu.memory_space<vmem>>, vector<1x1x128xf32>
    %63 = vector.shape_cast %62 : vector<1x1x128xf32> to vector<1x128xf32>
    %64 = arith.index_cast %c1_i32_21 : i32 to index
    %c0_26 = arith.constant 0 : index
    %c0_27 = arith.constant 0 : index
    %65 = vector.load %arg4[%64, %c0_26, %c0_27] : memref<16x1x128xf32, #tpu.memory_space<vmem>>, vector<1x1x128xf32>
    %66 = vector.shape_cast %65 : vector<1x1x128xf32> to vector<1x128xf32>
    %67 = arith.index_cast %c1_i32_21 : i32 to index
    %c0_28 = arith.constant 0 : index
    %c0_29 = arith.constant 0 : index
    %68 = vector.load %arg5[%67, %c0_28, %c0_29] : memref<16x1x128xf32, #tpu.memory_space<vmem>>, vector<1x1x128xf32>
    %69 = vector.shape_cast %68 : vector<1x1x128xf32> to vector<1x128xf32>
    %c1_i32_30 = arith.constant 1 : i32
    %70 = tpu.dynamic_rotate %53 by %c1_i32_30 dim 1 : vector<1x128xf32>, i32 -> vector<1x128xf32>
    %cst_31 = arith.constant 0.000000e+00 : f32
    %71 = vector.broadcast %cst_31 : f32 to vector<1x128xf32>
    %72 = arith.select %21, %70, %71 : vector<1x128xi1>, vector<1x128xf32>
    %c127_i32_32 = arith.constant 127 : i32
    %73 = tpu.dynamic_rotate %53 by %c127_i32_32 dim 1 : vector<1x128xf32>, i32 -> vector<1x128xf32>
    %cst_33 = arith.constant 0.000000e+00 : f32
    %74 = vector.broadcast %cst_33 : f32 to vector<1x128xf32>
    %75 = arith.select %23, %73, %74 : vector<1x128xi1>, vector<1x128xf32>
    %cst_34 = arith.constant 1.000000e+00 : f32
    %76 = vector.broadcast %cst_34 : f32 to vector<1x128xf32>
    %77 = arith.subf %76, %63 : vector<1x128xf32>
    %78 = arith.subf %77, %66 : vector<1x128xf32>
    %79 = arith.subf %78, %69 : vector<1x128xf32>
    %80 = arith.mulf %79, %60 : vector<1x128xf32>
    %81 = arith.mulf %63, %72 : vector<1x128xf32>
    %82 = arith.addf %80, %81 : vector<1x128xf32>
    %83 = arith.mulf %66, %53 : vector<1x128xf32>
    %84 = arith.addf %82, %83 : vector<1x128xf32>
    %85 = arith.mulf %69, %75 : vector<1x128xf32>
    %86 = arith.addf %84, %85 : vector<1x128xf32>
    %87 = arith.index_cast %c1_i32_21 : i32 to index
    %c0_35 = arith.constant 0 : index
    %c0_36 = arith.constant 0 : index
    %88 = vector.load %arg6[%87, %c0_35, %c0_36] : memref<16x1x128xf32, #tpu.memory_space<vmem>>, vector<1x1x128xf32>
    %89 = vector.shape_cast %88 : vector<1x1x128xf32> to vector<1x128xf32>
    %90 = vector.shape_cast %86 : vector<1x128xf32> to vector<1x1x128xf32>
    tpu.vector_store %arg6[%87, %c0_35, %c0_36], %90 {strides = array<i32>} : memref<16x1x128xf32, #tpu.memory_space<vmem>>, vector<1x1x128xf32>,
    %c2_i32 = arith.constant 2 : i32
    %91 = arith.index_cast %c2_i32 : i32 to index
    %c0_37 = arith.constant 0 : index
    %c0_38 = arith.constant 0 : index
    %92 = vector.load %arg2[%91, %c0_37, %c0_38] : memref<16x1x128xf32, #tpu.memory_space<vmem>>, vector<1x1x128xf32>
    %93 = vector.shape_cast %92 : vector<1x1x128xf32> to vector<1x128xf32>
    %94 = arith.index_cast %c2_i32 : i32 to index
    %c0_39 = arith.constant 0 : index
    %c0_40 = arith.constant 0 : index
    %95 = vector.load %arg3[%94, %c0_39, %c0_40] : memref<16x1x128xf32, #tpu.memory_space<vmem>>, vector<1x1x128xf32>
    %96 = vector.shape_cast %95 : vector<1x1x128xf32> to vector<1x128xf32>
    %97 = arith.index_cast %c2_i32 : i32 to index
    %c0_41 = arith.constant 0 : index
    %c0_42 = arith.constant 0 : index
    %98 = vector.load %arg4[%97, %c0_41, %c0_42] : memref<16x1x128xf32, #tpu.memory_space<vmem>>, vector<1x1x128xf32>
    %99 = vector.shape_cast %98 : vector<1x1x128xf32> to vector<1x128xf32>
    %100 = arith.index_cast %c2_i32 : i32 to index
    %c0_43 = arith.constant 0 : index
    %c0_44 = arith.constant 0 : index
    %101 = vector.load %arg5[%100, %c0_43, %c0_44] : memref<16x1x128xf32, #tpu.memory_space<vmem>>, vector<1x1x128xf32>
    %102 = vector.shape_cast %101 : vector<1x1x128xf32> to vector<1x128xf32>
    %c1_i32_45 = arith.constant 1 : i32
    %103 = tpu.dynamic_rotate %86 by %c1_i32_45 dim 1 : vector<1x128xf32>, i32 -> vector<1x128xf32>
    %cst_46 = arith.constant 0.000000e+00 : f32
    %104 = vector.broadcast %cst_46 : f32 to vector<1x128xf32>
    %105 = arith.select %21, %103, %104 : vector<1x128xi1>, vector<1x128xf32>
    %c127_i32_47 = arith.constant 127 : i32
    %106 = tpu.dynamic_rotate %86 by %c127_i32_47 dim 1 : vector<1x128xf32>, i32 -> vector<1x128xf32>
    %cst_48 = arith.constant 0.000000e+00 : f32
    %107 = vector.broadcast %cst_48 : f32 to vector<1x128xf32>
    %108 = arith.select %23, %106, %107 : vector<1x128xi1>, vector<1x128xf32>
    %cst_49 = arith.constant 1.000000e+00 : f32
    %109 = vector.broadcast %cst_49 : f32 to vector<1x128xf32>
    %110 = arith.subf %109, %96 : vector<1x128xf32>
    %111 = arith.subf %110, %99 : vector<1x128xf32>
    %112 = arith.subf %111, %102 : vector<1x128xf32>
    %113 = arith.mulf %112, %93 : vector<1x128xf32>
    %114 = arith.mulf %96, %105 : vector<1x128xf32>
    %115 = arith.addf %113, %114 : vector<1x128xf32>
    %116 = arith.mulf %99, %86 : vector<1x128xf32>
    %117 = arith.addf %115, %116 : vector<1x128xf32>
    %118 = arith.mulf %102, %108 : vector<1x128xf32>
    %119 = arith.addf %117, %118 : vector<1x128xf32>
    %120 = arith.index_cast %c2_i32 : i32 to index
    %c0_50 = arith.constant 0 : index
    %c0_51 = arith.constant 0 : index
    %121 = vector.load %arg6[%120, %c0_50, %c0_51] : memref<16x1x128xf32, #tpu.memory_space<vmem>>, vector<1x1x128xf32>
    %122 = vector.shape_cast %121 : vector<1x1x128xf32> to vector<1x128xf32>
    %123 = vector.shape_cast %119 : vector<1x128xf32> to vector<1x1x128xf32>
    tpu.vector_store %arg6[%120, %c0_50, %c0_51], %123 {strides = array<i32>} : memref<16x1x128xf32, #tpu.memory_space<vmem>>, vector<1x1x128xf32>,
    %c3_i32 = arith.constant 3 : i32
    %124 = arith.index_cast %c3_i32 : i32 to index
    %c0_52 = arith.constant 0 : index
    %c0_53 = arith.constant 0 : index
    %125 = vector.load %arg2[%124, %c0_52, %c0_53] : memref<16x1x128xf32, #tpu.memory_space<vmem>>, vector<1x1x128xf32>
    %126 = vector.shape_cast %125 : vector<1x1x128xf32> to vector<1x128xf32>
    %127 = arith.index_cast %c3_i32 : i32 to index
    %c0_54 = arith.constant 0 : index
    %c0_55 = arith.constant 0 : index
    %128 = vector.load %arg3[%127, %c0_54, %c0_55] : memref<16x1x128xf32, #tpu.memory_space<vmem>>, vector<1x1x128xf32>
    %129 = vector.shape_cast %128 : vector<1x1x128xf32> to vector<1x128xf32>
    %130 = arith.index_cast %c3_i32 : i32 to index
    %c0_56 = arith.constant 0 : index
    %c0_57 = arith.constant 0 : index
    %131 = vector.load %arg4[%130, %c0_56, %c0_57] : memref<16x1x128xf32, #tpu.memory_space<vmem>>, vector<1x1x128xf32>
    %132 = vector.shape_cast %131 : vector<1x1x128xf32> to vector<1x128xf32>
    %133 = arith.index_cast %c3_i32 : i32 to index
    %c0_58 = arith.constant 0 : index
    %c0_59 = arith.constant 0 : index
    %134 = vector.load %arg5[%133, %c0_58, %c0_59] : memref<16x1x128xf32, #tpu.memory_space<vmem>>, vector<1x1x128xf32>
    %135 = vector.shape_cast %134 : vector<1x1x128xf32> to vector<1x128xf32>
    %c1_i32_60 = arith.constant 1 : i32
    %136 = tpu.dynamic_rotate %119 by %c1_i32_60 dim 1 : vector<1x128xf32>, i32 -> vector<1x128xf32>
    %cst_61 = arith.constant 0.000000e+00 : f32
    %137 = vector.broadcast %cst_61 : f32 to vector<1x128xf32>
    %138 = arith.select %21, %136, %137 : vector<1x128xi1>, vector<1x128xf32>
    %c127_i32_62 = arith.constant 127 : i32
    %139 = tpu.dynamic_rotate %119 by %c127_i32_62 dim 1 : vector<1x128xf32>, i32 -> vector<1x128xf32>
    %cst_63 = arith.constant 0.000000e+00 : f32
    %140 = vector.broadcast %cst_63 : f32 to vector<1x128xf32>
    %141 = arith.select %23, %139, %140 : vector<1x128xi1>, vector<1x128xf32>
    %cst_64 = arith.constant 1.000000e+00 : f32
    %142 = vector.broadcast %cst_64 : f32 to vector<1x128xf32>
    %143 = arith.subf %142, %129 : vector<1x128xf32>
    %144 = arith.subf %143, %132 : vector<1x128xf32>
    %145 = arith.subf %144, %135 : vector<1x128xf32>
    %146 = arith.mulf %145, %126 : vector<1x128xf32>
    %147 = arith.mulf %129, %138 : vector<1x128xf32>
    %148 = arith.addf %146, %147 : vector<1x128xf32>
    %149 = arith.mulf %132, %119 : vector<1x128xf32>
    %150 = arith.addf %148, %149 : vector<1x128xf32>
    %151 = arith.mulf %135, %141 : vector<1x128xf32>
    %152 = arith.addf %150, %151 : vector<1x128xf32>
    %153 = arith.index_cast %c3_i32 : i32 to index
    %c0_65 = arith.constant 0 : index
    %c0_66 = arith.constant 0 : index
    %154 = vector.load %arg6[%153, %c0_65, %c0_66] : memref<16x1x128xf32, #tpu.memory_space<vmem>>, vector<1x1x128xf32>
    %155 = vector.shape_cast %154 : vector<1x1x128xf32> to vector<1x128xf32>
    %156 = vector.shape_cast %152 : vector<1x128xf32> to vector<1x1x128xf32>
    tpu.vector_store %arg6[%153, %c0_65, %c0_66], %156 {strides = array<i32>} : memref<16x1x128xf32, #tpu.memory_space<vmem>>, vector<1x1x128xf32>,
    %c4_i32 = arith.constant 4 : i32
    %157 = arith.index_cast %c4_i32 : i32 to index
    %c0_67 = arith.constant 0 : index
    %c0_68 = arith.constant 0 : index
    %158 = vector.load %arg2[%157, %c0_67, %c0_68] : memref<16x1x128xf32, #tpu.memory_space<vmem>>, vector<1x1x128xf32>
    %159 = vector.shape_cast %158 : vector<1x1x128xf32> to vector<1x128xf32>
    %160 = arith.index_cast %c4_i32 : i32 to index
    %c0_69 = arith.constant 0 : index
    %c0_70 = arith.constant 0 : index
    %161 = vector.load %arg3[%160, %c0_69, %c0_70] : memref<16x1x128xf32, #tpu.memory_space<vmem>>, vector<1x1x128xf32>
    %162 = vector.shape_cast %161 : vector<1x1x128xf32> to vector<1x128xf32>
    %163 = arith.index_cast %c4_i32 : i32 to index
    %c0_71 = arith.constant 0 : index
    %c0_72 = arith.constant 0 : index
    %164 = vector.load %arg4[%163, %c0_71, %c0_72] : memref<16x1x128xf32, #tpu.memory_space<vmem>>, vector<1x1x128xf32>
    %165 = vector.shape_cast %164 : vector<1x1x128xf32> to vector<1x128xf32>
    %166 = arith.index_cast %c4_i32 : i32 to index
    %c0_73 = arith.constant 0 : index
    %c0_74 = arith.constant 0 : index
    %167 = vector.load %arg5[%166, %c0_73, %c0_74] : memref<16x1x128xf32, #tpu.memory_space<vmem>>, vector<1x1x128xf32>
    %168 = vector.shape_cast %167 : vector<1x1x128xf32> to vector<1x128xf32>
    %c1_i32_75 = arith.constant 1 : i32
    %169 = tpu.dynamic_rotate %152 by %c1_i32_75 dim 1 : vector<1x128xf32>, i32 -> vector<1x128xf32>
    %cst_76 = arith.constant 0.000000e+00 : f32
    %170 = vector.broadcast %cst_76 : f32 to vector<1x128xf32>
    %171 = arith.select %21, %169, %170 : vector<1x128xi1>, vector<1x128xf32>
    %c127_i32_77 = arith.constant 127 : i32
    %172 = tpu.dynamic_rotate %152 by %c127_i32_77 dim 1 : vector<1x128xf32>, i32 -> vector<1x128xf32>
    %cst_78 = arith.constant 0.000000e+00 : f32
    %173 = vector.broadcast %cst_78 : f32 to vector<1x128xf32>
    %174 = arith.select %23, %172, %173 : vector<1x128xi1>, vector<1x128xf32>
    %cst_79 = arith.constant 1.000000e+00 : f32
    %175 = vector.broadcast %cst_79 : f32 to vector<1x128xf32>
    %176 = arith.subf %175, %162 : vector<1x128xf32>
    %177 = arith.subf %176, %165 : vector<1x128xf32>
    %178 = arith.subf %177, %168 : vector<1x128xf32>
    %179 = arith.mulf %178, %159 : vector<1x128xf32>
    %180 = arith.mulf %162, %171 : vector<1x128xf32>
    %181 = arith.addf %179, %180 : vector<1x128xf32>
    %182 = arith.mulf %165, %152 : vector<1x128xf32>
    %183 = arith.addf %181, %182 : vector<1x128xf32>
    %184 = arith.mulf %168, %174 : vector<1x128xf32>
    %185 = arith.addf %183, %184 : vector<1x128xf32>
    %186 = arith.index_cast %c4_i32 : i32 to index
    %c0_80 = arith.constant 0 : index
    %c0_81 = arith.constant 0 : index
    %187 = vector.load %arg6[%186, %c0_80, %c0_81] : memref<16x1x128xf32, #tpu.memory_space<vmem>>, vector<1x1x128xf32>
    %188 = vector.shape_cast %187 : vector<1x1x128xf32> to vector<1x128xf32>
    %189 = vector.shape_cast %185 : vector<1x128xf32> to vector<1x1x128xf32>
    tpu.vector_store %arg6[%186, %c0_80, %c0_81], %189 {strides = array<i32>} : memref<16x1x128xf32, #tpu.memory_space<vmem>>, vector<1x1x128xf32>,
    %c5_i32 = arith.constant 5 : i32
    %190 = arith.index_cast %c5_i32 : i32 to index
    %c0_82 = arith.constant 0 : index
    %c0_83 = arith.constant 0 : index
    %191 = vector.load %arg2[%190, %c0_82, %c0_83] : memref<16x1x128xf32, #tpu.memory_space<vmem>>, vector<1x1x128xf32>
    %192 = vector.shape_cast %191 : vector<1x1x128xf32> to vector<1x128xf32>
    %193 = arith.index_cast %c5_i32 : i32 to index
    %c0_84 = arith.constant 0 : index
    %c0_85 = arith.constant 0 : index
    %194 = vector.load %arg3[%193, %c0_84, %c0_85] : memref<16x1x128xf32, #tpu.memory_space<vmem>>, vector<1x1x128xf32>
    %195 = vector.shape_cast %194 : vector<1x1x128xf32> to vector<1x128xf32>
    %196 = arith.index_cast %c5_i32 : i32 to index
    %c0_86 = arith.constant 0 : index
    %c0_87 = arith.constant 0 : index
    %197 = vector.load %arg4[%196, %c0_86, %c0_87] : memref<16x1x128xf32, #tpu.memory_space<vmem>>, vector<1x1x128xf32>
    %198 = vector.shape_cast %197 : vector<1x1x128xf32> to vector<1x128xf32>
    %199 = arith.index_cast %c5_i32 : i32 to index
    %c0_88 = arith.constant 0 : index
    %c0_89 = arith.constant 0 : index
    %200 = vector.load %arg5[%199, %c0_88, %c0_89] : memref<16x1x128xf32, #tpu.memory_space<vmem>>, vector<1x1x128xf32>
    %201 = vector.shape_cast %200 : vector<1x1x128xf32> to vector<1x128xf32>
    %c1_i32_90 = arith.constant 1 : i32
    %202 = tpu.dynamic_rotate %185 by %c1_i32_90 dim 1 : vector<1x128xf32>, i32 -> vector<1x128xf32>
    %cst_91 = arith.constant 0.000000e+00 : f32
    %203 = vector.broadcast %cst_91 : f32 to vector<1x128xf32>
    %204 = arith.select %21, %202, %203 : vector<1x128xi1>, vector<1x128xf32>
    %c127_i32_92 = arith.constant 127 : i32
    %205 = tpu.dynamic_rotate %185 by %c127_i32_92 dim 1 : vector<1x128xf32>, i32 -> vector<1x128xf32>
    %cst_93 = arith.constant 0.000000e+00 : f32
    %206 = vector.broadcast %cst_93 : f32 to vector<1x128xf32>
    %207 = arith.select %23, %205, %206 : vector<1x128xi1>, vector<1x128xf32>
    %cst_94 = arith.constant 1.000000e+00 : f32
    %208 = vector.broadcast %cst_94 : f32 to vector<1x128xf32>
    %209 = arith.subf %208, %195 : vector<1x128xf32>
    %210 = arith.subf %209, %198 : vector<1x128xf32>
    %211 = arith.subf %210, %201 : vector<1x128xf32>
    %212 = arith.mulf %211, %192 : vector<1x128xf32>
    %213 = arith.mulf %195, %204 : vector<1x128xf32>
    %214 = arith.addf %212, %213 : vector<1x128xf32>
    %215 = arith.mulf %198, %185 : vector<1x128xf32>
    %216 = arith.addf %214, %215 : vector<1x128xf32>
    %217 = arith.mulf %201, %207 : vector<1x128xf32>
    %218 = arith.addf %216, %217 : vector<1x128xf32>
    %219 = arith.index_cast %c5_i32 : i32 to index
    %c0_95 = arith.constant 0 : index
    %c0_96 = arith.constant 0 : index
    %220 = vector.load %arg6[%219, %c0_95, %c0_96] : memref<16x1x128xf32, #tpu.memory_space<vmem>>, vector<1x1x128xf32>
    %221 = vector.shape_cast %220 : vector<1x1x128xf32> to vector<1x128xf32>
    %222 = vector.shape_cast %218 : vector<1x128xf32> to vector<1x1x128xf32>
    tpu.vector_store %arg6[%219, %c0_95, %c0_96], %222 {strides = array<i32>} : memref<16x1x128xf32, #tpu.memory_space<vmem>>, vector<1x1x128xf32>,
    %c6_i32 = arith.constant 6 : i32
    %223 = arith.index_cast %c6_i32 : i32 to index
    %c0_97 = arith.constant 0 : index
    %c0_98 = arith.constant 0 : index
    %224 = vector.load %arg2[%223, %c0_97, %c0_98] : memref<16x1x128xf32, #tpu.memory_space<vmem>>, vector<1x1x128xf32>
    %225 = vector.shape_cast %224 : vector<1x1x128xf32> to vector<1x128xf32>
    %226 = arith.index_cast %c6_i32 : i32 to index
    %c0_99 = arith.constant 0 : index
    %c0_100 = arith.constant 0 : index
    %227 = vector.load %arg3[%226, %c0_99, %c0_100] : memref<16x1x128xf32, #tpu.memory_space<vmem>>, vector<1x1x128xf32>
    %228 = vector.shape_cast %227 : vector<1x1x128xf32> to vector<1x128xf32>
    %229 = arith.index_cast %c6_i32 : i32 to index
    %c0_101 = arith.constant 0 : index
    %c0_102 = arith.constant 0 : index
    %230 = vector.load %arg4[%229, %c0_101, %c0_102] : memref<16x1x128xf32, #tpu.memory_space<vmem>>, vector<1x1x128xf32>
    %231 = vector.shape_cast %230 : vector<1x1x128xf32> to vector<1x128xf32>
    %232 = arith.index_cast %c6_i32 : i32 to index
    %c0_103 = arith.constant 0 : index
    %c0_104 = arith.constant 0 : index
    %233 = vector.load %arg5[%232, %c0_103, %c0_104] : memref<16x1x128xf32, #tpu.memory_space<vmem>>, vector<1x1x128xf32>
    %234 = vector.shape_cast %233 : vector<1x1x128xf32> to vector<1x128xf32>
    %c1_i32_105 = arith.constant 1 : i32
    %235 = tpu.dynamic_rotate %218 by %c1_i32_105 dim 1 : vector<1x128xf32>, i32 -> vector<1x128xf32>
    %cst_106 = arith.constant 0.000000e+00 : f32
    %236 = vector.broadcast %cst_106 : f32 to vector<1x128xf32>
    %237 = arith.select %21, %235, %236 : vector<1x128xi1>, vector<1x128xf32>
    %c127_i32_107 = arith.constant 127 : i32
    %238 = tpu.dynamic_rotate %218 by %c127_i32_107 dim 1 : vector<1x128xf32>, i32 -> vector<1x128xf32>
    %cst_108 = arith.constant 0.000000e+00 : f32
    %239 = vector.broadcast %cst_108 : f32 to vector<1x128xf32>
    %240 = arith.select %23, %238, %239 : vector<1x128xi1>, vector<1x128xf32>
    %cst_109 = arith.constant 1.000000e+00 : f32
    %241 = vector.broadcast %cst_109 : f32 to vector<1x128xf32>
    %242 = arith.subf %241, %228 : vector<1x128xf32>
    %243 = arith.subf %242, %231 : vector<1x128xf32>
    %244 = arith.subf %243, %234 : vector<1x128xf32>
    %245 = arith.mulf %244, %225 : vector<1x128xf32>
    %246 = arith.mulf %228, %237 : vector<1x128xf32>
    %247 = arith.addf %245, %246 : vector<1x128xf32>
    %248 = arith.mulf %231, %218 : vector<1x128xf32>
    %249 = arith.addf %247, %248 : vector<1x128xf32>
    %250 = arith.mulf %234, %240 : vector<1x128xf32>
    %251 = arith.addf %249, %250 : vector<1x128xf32>
    %252 = arith.index_cast %c6_i32 : i32 to index
    %c0_110 = arith.constant 0 : index
    %c0_111 = arith.constant 0 : index
    %253 = vector.load %arg6[%252, %c0_110, %c0_111] : memref<16x1x128xf32, #tpu.memory_space<vmem>>, vector<1x1x128xf32>
    %254 = vector.shape_cast %253 : vector<1x1x128xf32> to vector<1x128xf32>
    %255 = vector.shape_cast %251 : vector<1x128xf32> to vector<1x1x128xf32>
    tpu.vector_store %arg6[%252, %c0_110, %c0_111], %255 {strides = array<i32>} : memref<16x1x128xf32, #tpu.memory_space<vmem>>, vector<1x1x128xf32>,
    %c7_i32 = arith.constant 7 : i32
    %256 = arith.index_cast %c7_i32 : i32 to index
    %c0_112 = arith.constant 0 : index
    %c0_113 = arith.constant 0 : index
    %257 = vector.load %arg2[%256, %c0_112, %c0_113] : memref<16x1x128xf32, #tpu.memory_space<vmem>>, vector<1x1x128xf32>
    %258 = vector.shape_cast %257 : vector<1x1x128xf32> to vector<1x128xf32>
    %259 = arith.index_cast %c7_i32 : i32 to index
    %c0_114 = arith.constant 0 : index
    %c0_115 = arith.constant 0 : index
    %260 = vector.load %arg3[%259, %c0_114, %c0_115] : memref<16x1x128xf32, #tpu.memory_space<vmem>>, vector<1x1x128xf32>
    %261 = vector.shape_cast %260 : vector<1x1x128xf32> to vector<1x128xf32>
    %262 = arith.index_cast %c7_i32 : i32 to index
    %c0_116 = arith.constant 0 : index
    %c0_117 = arith.constant 0 : index
    %263 = vector.load %arg4[%262, %c0_116, %c0_117] : memref<16x1x128xf32, #tpu.memory_space<vmem>>, vector<1x1x128xf32>
    %264 = vector.shape_cast %263 : vector<1x1x128xf32> to vector<1x128xf32>
    %265 = arith.index_cast %c7_i32 : i32 to index
    %c0_118 = arith.constant 0 : index
    %c0_119 = arith.constant 0 : index
    %266 = vector.load %arg5[%265, %c0_118, %c0_119] : memref<16x1x128xf32, #tpu.memory_space<vmem>>, vector<1x1x128xf32>
    %267 = vector.shape_cast %266 : vector<1x1x128xf32> to vector<1x128xf32>
    %c1_i32_120 = arith.constant 1 : i32
    %268 = tpu.dynamic_rotate %251 by %c1_i32_120 dim 1 : vector<1x128xf32>, i32 -> vector<1x128xf32>
    %cst_121 = arith.constant 0.000000e+00 : f32
    %269 = vector.broadcast %cst_121 : f32 to vector<1x128xf32>
    %270 = arith.select %21, %268, %269 : vector<1x128xi1>, vector<1x128xf32>
    %c127_i32_122 = arith.constant 127 : i32
    %271 = tpu.dynamic_rotate %251 by %c127_i32_122 dim 1 : vector<1x128xf32>, i32 -> vector<1x128xf32>
    %cst_123 = arith.constant 0.000000e+00 : f32
    %272 = vector.broadcast %cst_123 : f32 to vector<1x128xf32>
    %273 = arith.select %23, %271, %272 : vector<1x128xi1>, vector<1x128xf32>
    %cst_124 = arith.constant 1.000000e+00 : f32
    %274 = vector.broadcast %cst_124 : f32 to vector<1x128xf32>
    %275 = arith.subf %274, %261 : vector<1x128xf32>
    %276 = arith.subf %275, %264 : vector<1x128xf32>
    %277 = arith.subf %276, %267 : vector<1x128xf32>
    %278 = arith.mulf %277, %258 : vector<1x128xf32>
    %279 = arith.mulf %261, %270 : vector<1x128xf32>
    %280 = arith.addf %278, %279 : vector<1x128xf32>
    %281 = arith.mulf %264, %251 : vector<1x128xf32>
    %282 = arith.addf %280, %281 : vector<1x128xf32>
    %283 = arith.mulf %267, %273 : vector<1x128xf32>
    %284 = arith.addf %282, %283 : vector<1x128xf32>
    %285 = arith.index_cast %c7_i32 : i32 to index
    %c0_125 = arith.constant 0 : index
    %c0_126 = arith.constant 0 : index
    %286 = vector.load %arg6[%285, %c0_125, %c0_126] : memref<16x1x128xf32, #tpu.memory_space<vmem>>, vector<1x1x128xf32>
    %287 = vector.shape_cast %286 : vector<1x1x128xf32> to vector<1x128xf32>
    %288 = vector.shape_cast %284 : vector<1x128xf32> to vector<1x1x128xf32>
    tpu.vector_store %arg6[%285, %c0_125, %c0_126], %288 {strides = array<i32>} : memref<16x1x128xf32, #tpu.memory_space<vmem>>, vector<1x1x128xf32>,
    %c8_i32 = arith.constant 8 : i32
    %289 = arith.index_cast %c8_i32 : i32 to index
    %c0_127 = arith.constant 0 : index
    %c0_128 = arith.constant 0 : index
    %290 = vector.load %arg2[%289, %c0_127, %c0_128] : memref<16x1x128xf32, #tpu.memory_space<vmem>>, vector<1x1x128xf32>
    %291 = vector.shape_cast %290 : vector<1x1x128xf32> to vector<1x128xf32>
    %292 = arith.index_cast %c8_i32 : i32 to index
    %c0_129 = arith.constant 0 : index
    %c0_130 = arith.constant 0 : index
    %293 = vector.load %arg3[%292, %c0_129, %c0_130] : memref<16x1x128xf32, #tpu.memory_space<vmem>>, vector<1x1x128xf32>
    %294 = vector.shape_cast %293 : vector<1x1x128xf32> to vector<1x128xf32>
    %295 = arith.index_cast %c8_i32 : i32 to index
    %c0_131 = arith.constant 0 : index
    %c0_132 = arith.constant 0 : index
    %296 = vector.load %arg4[%295, %c0_131, %c0_132] : memref<16x1x128xf32, #tpu.memory_space<vmem>>, vector<1x1x128xf32>
    %297 = vector.shape_cast %296 : vector<1x1x128xf32> to vector<1x128xf32>
    %298 = arith.index_cast %c8_i32 : i32 to index
    %c0_133 = arith.constant 0 : index
    %c0_134 = arith.constant 0 : index
    %299 = vector.load %arg5[%298, %c0_133, %c0_134] : memref<16x1x128xf32, #tpu.memory_space<vmem>>, vector<1x1x128xf32>
    %300 = vector.shape_cast %299 : vector<1x1x128xf32> to vector<1x128xf32>
    %c1_i32_135 = arith.constant 1 : i32
    %301 = tpu.dynamic_rotate %284 by %c1_i32_135 dim 1 : vector<1x128xf32>, i32 -> vector<1x128xf32>
    %cst_136 = arith.constant 0.000000e+00 : f32
    %302 = vector.broadcast %cst_136 : f32 to vector<1x128xf32>
    %303 = arith.select %21, %301, %302 : vector<1x128xi1>, vector<1x128xf32>
    %c127_i32_137 = arith.constant 127 : i32
    %304 = tpu.dynamic_rotate %284 by %c127_i32_137 dim 1 : vector<1x128xf32>, i32 -> vector<1x128xf32>
    %cst_138 = arith.constant 0.000000e+00 : f32
    %305 = vector.broadcast %cst_138 : f32 to vector<1x128xf32>
    %306 = arith.select %23, %304, %305 : vector<1x128xi1>, vector<1x128xf32>
    %cst_139 = arith.constant 1.000000e+00 : f32
    %307 = vector.broadcast %cst_139 : f32 to vector<1x128xf32>
    %308 = arith.subf %307, %294 : vector<1x128xf32>
    %309 = arith.subf %308, %297 : vector<1x128xf32>
    %310 = arith.subf %309, %300 : vector<1x128xf32>
    %311 = arith.mulf %310, %291 : vector<1x128xf32>
    %312 = arith.mulf %294, %303 : vector<1x128xf32>
    %313 = arith.addf %311, %312 : vector<1x128xf32>
    %314 = arith.mulf %297, %284 : vector<1x128xf32>
    %315 = arith.addf %313, %314 : vector<1x128xf32>
    %316 = arith.mulf %300, %306 : vector<1x128xf32>
    %317 = arith.addf %315, %316 : vector<1x128xf32>
    %318 = arith.index_cast %c8_i32 : i32 to index
    %c0_140 = arith.constant 0 : index
    %c0_141 = arith.constant 0 : index
    %319 = vector.load %arg6[%318, %c0_140, %c0_141] : memref<16x1x128xf32, #tpu.memory_space<vmem>>, vector<1x1x128xf32>
    %320 = vector.shape_cast %319 : vector<1x1x128xf32> to vector<1x128xf32>
    %321 = vector.shape_cast %317 : vector<1x128xf32> to vector<1x1x128xf32>
    tpu.vector_store %arg6[%318, %c0_140, %c0_141], %321 {strides = array<i32>} : memref<16x1x128xf32, #tpu.memory_space<vmem>>, vector<1x1x128xf32>,
    %c9_i32 = arith.constant 9 : i32
    %322 = arith.index_cast %c9_i32 : i32 to index
    %c0_142 = arith.constant 0 : index
    %c0_143 = arith.constant 0 : index
    %323 = vector.load %arg2[%322, %c0_142, %c0_143] : memref<16x1x128xf32, #tpu.memory_space<vmem>>, vector<1x1x128xf32>
    %324 = vector.shape_cast %323 : vector<1x1x128xf32> to vector<1x128xf32>
    %325 = arith.index_cast %c9_i32 : i32 to index
    %c0_144 = arith.constant 0 : index
    %c0_145 = arith.constant 0 : index
    %326 = vector.load %arg3[%325, %c0_144, %c0_145] : memref<16x1x128xf32, #tpu.memory_space<vmem>>, vector<1x1x128xf32>
    %327 = vector.shape_cast %326 : vector<1x1x128xf32> to vector<1x128xf32>
    %328 = arith.index_cast %c9_i32 : i32 to index
    %c0_146 = arith.constant 0 : index
    %c0_147 = arith.constant 0 : index
    %329 = vector.load %arg4[%328, %c0_146, %c0_147] : memref<16x1x128xf32, #tpu.memory_space<vmem>>, vector<1x1x128xf32>
    %330 = vector.shape_cast %329 : vector<1x1x128xf32> to vector<1x128xf32>
    %331 = arith.index_cast %c9_i32 : i32 to index
    %c0_148 = arith.constant 0 : index
    %c0_149 = arith.constant 0 : index
    %332 = vector.load %arg5[%331, %c0_148, %c0_149] : memref<16x1x128xf32, #tpu.memory_space<vmem>>, vector<1x1x128xf32>
    %333 = vector.shape_cast %332 : vector<1x1x128xf32> to vector<1x128xf32>
    %c1_i32_150 = arith.constant 1 : i32
    %334 = tpu.dynamic_rotate %317 by %c1_i32_150 dim 1 : vector<1x128xf32>, i32 -> vector<1x128xf32>
    %cst_151 = arith.constant 0.000000e+00 : f32
    %335 = vector.broadcast %cst_151 : f32 to vector<1x128xf32>
    %336 = arith.select %21, %334, %335 : vector<1x128xi1>, vector<1x128xf32>
    %c127_i32_152 = arith.constant 127 : i32
    %337 = tpu.dynamic_rotate %317 by %c127_i32_152 dim 1 : vector<1x128xf32>, i32 -> vector<1x128xf32>
    %cst_153 = arith.constant 0.000000e+00 : f32
    %338 = vector.broadcast %cst_153 : f32 to vector<1x128xf32>
    %339 = arith.select %23, %337, %338 : vector<1x128xi1>, vector<1x128xf32>
    %cst_154 = arith.constant 1.000000e+00 : f32
    %340 = vector.broadcast %cst_154 : f32 to vector<1x128xf32>
    %341 = arith.subf %340, %327 : vector<1x128xf32>
    %342 = arith.subf %341, %330 : vector<1x128xf32>
    %343 = arith.subf %342, %333 : vector<1x128xf32>
    %344 = arith.mulf %343, %324 : vector<1x128xf32>
    %345 = arith.mulf %327, %336 : vector<1x128xf32>
    %346 = arith.addf %344, %345 : vector<1x128xf32>
    %347 = arith.mulf %330, %317 : vector<1x128xf32>
    %348 = arith.addf %346, %347 : vector<1x128xf32>
    %349 = arith.mulf %333, %339 : vector<1x128xf32>
    %350 = arith.addf %348, %349 : vector<1x128xf32>
    %351 = arith.index_cast %c9_i32 : i32 to index
    %c0_155 = arith.constant 0 : index
    %c0_156 = arith.constant 0 : index
    %352 = vector.load %arg6[%351, %c0_155, %c0_156] : memref<16x1x128xf32, #tpu.memory_space<vmem>>, vector<1x1x128xf32>
    %353 = vector.shape_cast %352 : vector<1x1x128xf32> to vector<1x128xf32>
    %354 = vector.shape_cast %350 : vector<1x128xf32> to vector<1x1x128xf32>
    tpu.vector_store %arg6[%351, %c0_155, %c0_156], %354 {strides = array<i32>} : memref<16x1x128xf32, #tpu.memory_space<vmem>>, vector<1x1x128xf32>,
    %c10_i32 = arith.constant 10 : i32
    %355 = arith.index_cast %c10_i32 : i32 to index
    %c0_157 = arith.constant 0 : index
    %c0_158 = arith.constant 0 : index
    %356 = vector.load %arg2[%355, %c0_157, %c0_158] : memref<16x1x128xf32, #tpu.memory_space<vmem>>, vector<1x1x128xf32>
    %357 = vector.shape_cast %356 : vector<1x1x128xf32> to vector<1x128xf32>
    %358 = arith.index_cast %c10_i32 : i32 to index
    %c0_159 = arith.constant 0 : index
    %c0_160 = arith.constant 0 : index
    %359 = vector.load %arg3[%358, %c0_159, %c0_160] : memref<16x1x128xf32, #tpu.memory_space<vmem>>, vector<1x1x128xf32>
    %360 = vector.shape_cast %359 : vector<1x1x128xf32> to vector<1x128xf32>
    %361 = arith.index_cast %c10_i32 : i32 to index
    %c0_161 = arith.constant 0 : index
    %c0_162 = arith.constant 0 : index
    %362 = vector.load %arg4[%361, %c0_161, %c0_162] : memref<16x1x128xf32, #tpu.memory_space<vmem>>, vector<1x1x128xf32>
    %363 = vector.shape_cast %362 : vector<1x1x128xf32> to vector<1x128xf32>
    %364 = arith.index_cast %c10_i32 : i32 to index
    %c0_163 = arith.constant 0 : index
    %c0_164 = arith.constant 0 : index
    %365 = vector.load %arg5[%364, %c0_163, %c0_164] : memref<16x1x128xf32, #tpu.memory_space<vmem>>, vector<1x1x128xf32>
    %366 = vector.shape_cast %365 : vector<1x1x128xf32> to vector<1x128xf32>
    %c1_i32_165 = arith.constant 1 : i32
    %367 = tpu.dynamic_rotate %350 by %c1_i32_165 dim 1 : vector<1x128xf32>, i32 -> vector<1x128xf32>
    %cst_166 = arith.constant 0.000000e+00 : f32
    %368 = vector.broadcast %cst_166 : f32 to vector<1x128xf32>
    %369 = arith.select %21, %367, %368 : vector<1x128xi1>, vector<1x128xf32>
    %c127_i32_167 = arith.constant 127 : i32
    %370 = tpu.dynamic_rotate %350 by %c127_i32_167 dim 1 : vector<1x128xf32>, i32 -> vector<1x128xf32>
    %cst_168 = arith.constant 0.000000e+00 : f32
    %371 = vector.broadcast %cst_168 : f32 to vector<1x128xf32>
    %372 = arith.select %23, %370, %371 : vector<1x128xi1>, vector<1x128xf32>
    %cst_169 = arith.constant 1.000000e+00 : f32
    %373 = vector.broadcast %cst_169 : f32 to vector<1x128xf32>
    %374 = arith.subf %373, %360 : vector<1x128xf32>
    %375 = arith.subf %374, %363 : vector<1x128xf32>
    %376 = arith.subf %375, %366 : vector<1x128xf32>
    %377 = arith.mulf %376, %357 : vector<1x128xf32>
    %378 = arith.mulf %360, %369 : vector<1x128xf32>
    %379 = arith.addf %377, %378 : vector<1x128xf32>
    %380 = arith.mulf %363, %350 : vector<1x128xf32>
    %381 = arith.addf %379, %380 : vector<1x128xf32>
    %382 = arith.mulf %366, %372 : vector<1x128xf32>
    %383 = arith.addf %381, %382 : vector<1x128xf32>
    %384 = arith.index_cast %c10_i32 : i32 to index
    %c0_170 = arith.constant 0 : index
    %c0_171 = arith.constant 0 : index
    %385 = vector.load %arg6[%384, %c0_170, %c0_171] : memref<16x1x128xf32, #tpu.memory_space<vmem>>, vector<1x1x128xf32>
    %386 = vector.shape_cast %385 : vector<1x1x128xf32> to vector<1x128xf32>
    %387 = vector.shape_cast %383 : vector<1x128xf32> to vector<1x1x128xf32>
    tpu.vector_store %arg6[%384, %c0_170, %c0_171], %387 {strides = array<i32>} : memref<16x1x128xf32, #tpu.memory_space<vmem>>, vector<1x1x128xf32>,
    %c11_i32 = arith.constant 11 : i32
    %388 = arith.index_cast %c11_i32 : i32 to index
    %c0_172 = arith.constant 0 : index
    %c0_173 = arith.constant 0 : index
    %389 = vector.load %arg2[%388, %c0_172, %c0_173] : memref<16x1x128xf32, #tpu.memory_space<vmem>>, vector<1x1x128xf32>
    %390 = vector.shape_cast %389 : vector<1x1x128xf32> to vector<1x128xf32>
    %391 = arith.index_cast %c11_i32 : i32 to index
    %c0_174 = arith.constant 0 : index
    %c0_175 = arith.constant 0 : index
    %392 = vector.load %arg3[%391, %c0_174, %c0_175] : memref<16x1x128xf32, #tpu.memory_space<vmem>>, vector<1x1x128xf32>
    %393 = vector.shape_cast %392 : vector<1x1x128xf32> to vector<1x128xf32>
    %394 = arith.index_cast %c11_i32 : i32 to index
    %c0_176 = arith.constant 0 : index
    %c0_177 = arith.constant 0 : index
    %395 = vector.load %arg4[%394, %c0_176, %c0_177] : memref<16x1x128xf32, #tpu.memory_space<vmem>>, vector<1x1x128xf32>
    %396 = vector.shape_cast %395 : vector<1x1x128xf32> to vector<1x128xf32>
    %397 = arith.index_cast %c11_i32 : i32 to index
    %c0_178 = arith.constant 0 : index
    %c0_179 = arith.constant 0 : index
    %398 = vector.load %arg5[%397, %c0_178, %c0_179] : memref<16x1x128xf32, #tpu.memory_space<vmem>>, vector<1x1x128xf32>
    %399 = vector.shape_cast %398 : vector<1x1x128xf32> to vector<1x128xf32>
    %c1_i32_180 = arith.constant 1 : i32
    %400 = tpu.dynamic_rotate %383 by %c1_i32_180 dim 1 : vector<1x128xf32>, i32 -> vector<1x128xf32>
    %cst_181 = arith.constant 0.000000e+00 : f32
    %401 = vector.broadcast %cst_181 : f32 to vector<1x128xf32>
    %402 = arith.select %21, %400, %401 : vector<1x128xi1>, vector<1x128xf32>
    %c127_i32_182 = arith.constant 127 : i32
    %403 = tpu.dynamic_rotate %383 by %c127_i32_182 dim 1 : vector<1x128xf32>, i32 -> vector<1x128xf32>
    %cst_183 = arith.constant 0.000000e+00 : f32
    %404 = vector.broadcast %cst_183 : f32 to vector<1x128xf32>
    %405 = arith.select %23, %403, %404 : vector<1x128xi1>, vector<1x128xf32>
    %cst_184 = arith.constant 1.000000e+00 : f32
    %406 = vector.broadcast %cst_184 : f32 to vector<1x128xf32>
    %407 = arith.subf %406, %393 : vector<1x128xf32>
    %408 = arith.subf %407, %396 : vector<1x128xf32>
    %409 = arith.subf %408, %399 : vector<1x128xf32>
    %410 = arith.mulf %409, %390 : vector<1x128xf32>
    %411 = arith.mulf %393, %402 : vector<1x128xf32>
    %412 = arith.addf %410, %411 : vector<1x128xf32>
    %413 = arith.mulf %396, %383 : vector<1x128xf32>
    %414 = arith.addf %412, %413 : vector<1x128xf32>
    %415 = arith.mulf %399, %405 : vector<1x128xf32>
    %416 = arith.addf %414, %415 : vector<1x128xf32>
    %417 = arith.index_cast %c11_i32 : i32 to index
    %c0_185 = arith.constant 0 : index
    %c0_186 = arith.constant 0 : index
    %418 = vector.load %arg6[%417, %c0_185, %c0_186] : memref<16x1x128xf32, #tpu.memory_space<vmem>>, vector<1x1x128xf32>
    %419 = vector.shape_cast %418 : vector<1x1x128xf32> to vector<1x128xf32>
    %420 = vector.shape_cast %416 : vector<1x128xf32> to vector<1x1x128xf32>
    tpu.vector_store %arg6[%417, %c0_185, %c0_186], %420 {strides = array<i32>} : memref<16x1x128xf32, #tpu.memory_space<vmem>>, vector<1x1x128xf32>,
    %c12_i32 = arith.constant 12 : i32
    %421 = arith.index_cast %c12_i32 : i32 to index
    %c0_187 = arith.constant 0 : index
    %c0_188 = arith.constant 0 : index
    %422 = vector.load %arg2[%421, %c0_187, %c0_188] : memref<16x1x128xf32, #tpu.memory_space<vmem>>, vector<1x1x128xf32>
    %423 = vector.shape_cast %422 : vector<1x1x128xf32> to vector<1x128xf32>
    %424 = arith.index_cast %c12_i32 : i32 to index
    %c0_189 = arith.constant 0 : index
    %c0_190 = arith.constant 0 : index
    %425 = vector.load %arg3[%424, %c0_189, %c0_190] : memref<16x1x128xf32, #tpu.memory_space<vmem>>, vector<1x1x128xf32>
    %426 = vector.shape_cast %425 : vector<1x1x128xf32> to vector<1x128xf32>
    %427 = arith.index_cast %c12_i32 : i32 to index
    %c0_191 = arith.constant 0 : index
    %c0_192 = arith.constant 0 : index
    %428 = vector.load %arg4[%427, %c0_191, %c0_192] : memref<16x1x128xf32, #tpu.memory_space<vmem>>, vector<1x1x128xf32>
    %429 = vector.shape_cast %428 : vector<1x1x128xf32> to vector<1x128xf32>
    %430 = arith.index_cast %c12_i32 : i32 to index
    %c0_193 = arith.constant 0 : index
    %c0_194 = arith.constant 0 : index
    %431 = vector.load %arg5[%430, %c0_193, %c0_194] : memref<16x1x128xf32, #tpu.memory_space<vmem>>, vector<1x1x128xf32>
    %432 = vector.shape_cast %431 : vector<1x1x128xf32> to vector<1x128xf32>
    %c1_i32_195 = arith.constant 1 : i32
    %433 = tpu.dynamic_rotate %416 by %c1_i32_195 dim 1 : vector<1x128xf32>, i32 -> vector<1x128xf32>
    %cst_196 = arith.constant 0.000000e+00 : f32
    %434 = vector.broadcast %cst_196 : f32 to vector<1x128xf32>
    %435 = arith.select %21, %433, %434 : vector<1x128xi1>, vector<1x128xf32>
    %c127_i32_197 = arith.constant 127 : i32
    %436 = tpu.dynamic_rotate %416 by %c127_i32_197 dim 1 : vector<1x128xf32>, i32 -> vector<1x128xf32>
    %cst_198 = arith.constant 0.000000e+00 : f32
    %437 = vector.broadcast %cst_198 : f32 to vector<1x128xf32>
    %438 = arith.select %23, %436, %437 : vector<1x128xi1>, vector<1x128xf32>
    %cst_199 = arith.constant 1.000000e+00 : f32
    %439 = vector.broadcast %cst_199 : f32 to vector<1x128xf32>
    %440 = arith.subf %439, %426 : vector<1x128xf32>
    %441 = arith.subf %440, %429 : vector<1x128xf32>
    %442 = arith.subf %441, %432 : vector<1x128xf32>
    %443 = arith.mulf %442, %423 : vector<1x128xf32>
    %444 = arith.mulf %426, %435 : vector<1x128xf32>
    %445 = arith.addf %443, %444 : vector<1x128xf32>
    %446 = arith.mulf %429, %416 : vector<1x128xf32>
    %447 = arith.addf %445, %446 : vector<1x128xf32>
    %448 = arith.mulf %432, %438 : vector<1x128xf32>
    %449 = arith.addf %447, %448 : vector<1x128xf32>
    %450 = arith.index_cast %c12_i32 : i32 to index
    %c0_200 = arith.constant 0 : index
    %c0_201 = arith.constant 0 : index
    %451 = vector.load %arg6[%450, %c0_200, %c0_201] : memref<16x1x128xf32, #tpu.memory_space<vmem>>, vector<1x1x128xf32>
    %452 = vector.shape_cast %451 : vector<1x1x128xf32> to vector<1x128xf32>
    %453 = vector.shape_cast %449 : vector<1x128xf32> to vector<1x1x128xf32>
    tpu.vector_store %arg6[%450, %c0_200, %c0_201], %453 {strides = array<i32>} : memref<16x1x128xf32, #tpu.memory_space<vmem>>, vector<1x1x128xf32>,
    %c13_i32 = arith.constant 13 : i32
    %454 = arith.index_cast %c13_i32 : i32 to index
    %c0_202 = arith.constant 0 : index
    %c0_203 = arith.constant 0 : index
    %455 = vector.load %arg2[%454, %c0_202, %c0_203] : memref<16x1x128xf32, #tpu.memory_space<vmem>>, vector<1x1x128xf32>
    %456 = vector.shape_cast %455 : vector<1x1x128xf32> to vector<1x128xf32>
    %457 = arith.index_cast %c13_i32 : i32 to index
    %c0_204 = arith.constant 0 : index
    %c0_205 = arith.constant 0 : index
    %458 = vector.load %arg3[%457, %c0_204, %c0_205] : memref<16x1x128xf32, #tpu.memory_space<vmem>>, vector<1x1x128xf32>
    %459 = vector.shape_cast %458 : vector<1x1x128xf32> to vector<1x128xf32>
    %460 = arith.index_cast %c13_i32 : i32 to index
    %c0_206 = arith.constant 0 : index
    %c0_207 = arith.constant 0 : index
    %461 = vector.load %arg4[%460, %c0_206, %c0_207] : memref<16x1x128xf32, #tpu.memory_space<vmem>>, vector<1x1x128xf32>
    %462 = vector.shape_cast %461 : vector<1x1x128xf32> to vector<1x128xf32>
    %463 = arith.index_cast %c13_i32 : i32 to index
    %c0_208 = arith.constant 0 : index
    %c0_209 = arith.constant 0 : index
    %464 = vector.load %arg5[%463, %c0_208, %c0_209] : memref<16x1x128xf32, #tpu.memory_space<vmem>>, vector<1x1x128xf32>
    %465 = vector.shape_cast %464 : vector<1x1x128xf32> to vector<1x128xf32>
    %c1_i32_210 = arith.constant 1 : i32
    %466 = tpu.dynamic_rotate %449 by %c1_i32_210 dim 1 : vector<1x128xf32>, i32 -> vector<1x128xf32>
    %cst_211 = arith.constant 0.000000e+00 : f32
    %467 = vector.broadcast %cst_211 : f32 to vector<1x128xf32>
    %468 = arith.select %21, %466, %467 : vector<1x128xi1>, vector<1x128xf32>
    %c127_i32_212 = arith.constant 127 : i32
    %469 = tpu.dynamic_rotate %449 by %c127_i32_212 dim 1 : vector<1x128xf32>, i32 -> vector<1x128xf32>
    %cst_213 = arith.constant 0.000000e+00 : f32
    %470 = vector.broadcast %cst_213 : f32 to vector<1x128xf32>
    %471 = arith.select %23, %469, %470 : vector<1x128xi1>, vector<1x128xf32>
    %cst_214 = arith.constant 1.000000e+00 : f32
    %472 = vector.broadcast %cst_214 : f32 to vector<1x128xf32>
    %473 = arith.subf %472, %459 : vector<1x128xf32>
    %474 = arith.subf %473, %462 : vector<1x128xf32>
    %475 = arith.subf %474, %465 : vector<1x128xf32>
    %476 = arith.mulf %475, %456 : vector<1x128xf32>
    %477 = arith.mulf %459, %468 : vector<1x128xf32>
    %478 = arith.addf %476, %477 : vector<1x128xf32>
    %479 = arith.mulf %462, %449 : vector<1x128xf32>
    %480 = arith.addf %478, %479 : vector<1x128xf32>
    %481 = arith.mulf %465, %471 : vector<1x128xf32>
    %482 = arith.addf %480, %481 : vector<1x128xf32>
    %483 = arith.index_cast %c13_i32 : i32 to index
    %c0_215 = arith.constant 0 : index
    %c0_216 = arith.constant 0 : index
    %484 = vector.load %arg6[%483, %c0_215, %c0_216] : memref<16x1x128xf32, #tpu.memory_space<vmem>>, vector<1x1x128xf32>
    %485 = vector.shape_cast %484 : vector<1x1x128xf32> to vector<1x128xf32>
    %486 = vector.shape_cast %482 : vector<1x128xf32> to vector<1x1x128xf32>
    tpu.vector_store %arg6[%483, %c0_215, %c0_216], %486 {strides = array<i32>} : memref<16x1x128xf32, #tpu.memory_space<vmem>>, vector<1x1x128xf32>,
    %c14_i32 = arith.constant 14 : i32
    %487 = arith.index_cast %c14_i32 : i32 to index
    %c0_217 = arith.constant 0 : index
    %c0_218 = arith.constant 0 : index
    %488 = vector.load %arg2[%487, %c0_217, %c0_218] : memref<16x1x128xf32, #tpu.memory_space<vmem>>, vector<1x1x128xf32>
    %489 = vector.shape_cast %488 : vector<1x1x128xf32> to vector<1x128xf32>
    %490 = arith.index_cast %c14_i32 : i32 to index
    %c0_219 = arith.constant 0 : index
    %c0_220 = arith.constant 0 : index
    %491 = vector.load %arg3[%490, %c0_219, %c0_220] : memref<16x1x128xf32, #tpu.memory_space<vmem>>, vector<1x1x128xf32>
    %492 = vector.shape_cast %491 : vector<1x1x128xf32> to vector<1x128xf32>
    %493 = arith.index_cast %c14_i32 : i32 to index
    %c0_221 = arith.constant 0 : index
    %c0_222 = arith.constant 0 : index
    %494 = vector.load %arg4[%493, %c0_221, %c0_222] : memref<16x1x128xf32, #tpu.memory_space<vmem>>, vector<1x1x128xf32>
    %495 = vector.shape_cast %494 : vector<1x1x128xf32> to vector<1x128xf32>
    %496 = arith.index_cast %c14_i32 : i32 to index
    %c0_223 = arith.constant 0 : index
    %c0_224 = arith.constant 0 : index
    %497 = vector.load %arg5[%496, %c0_223, %c0_224] : memref<16x1x128xf32, #tpu.memory_space<vmem>>, vector<1x1x128xf32>
    %498 = vector.shape_cast %497 : vector<1x1x128xf32> to vector<1x128xf32>
    %c1_i32_225 = arith.constant 1 : i32
    %499 = tpu.dynamic_rotate %482 by %c1_i32_225 dim 1 : vector<1x128xf32>, i32 -> vector<1x128xf32>
    %cst_226 = arith.constant 0.000000e+00 : f32
    %500 = vector.broadcast %cst_226 : f32 to vector<1x128xf32>
    %501 = arith.select %21, %499, %500 : vector<1x128xi1>, vector<1x128xf32>
    %c127_i32_227 = arith.constant 127 : i32
    %502 = tpu.dynamic_rotate %482 by %c127_i32_227 dim 1 : vector<1x128xf32>, i32 -> vector<1x128xf32>
    %cst_228 = arith.constant 0.000000e+00 : f32
    %503 = vector.broadcast %cst_228 : f32 to vector<1x128xf32>
    %504 = arith.select %23, %502, %503 : vector<1x128xi1>, vector<1x128xf32>
    %cst_229 = arith.constant 1.000000e+00 : f32
    %505 = vector.broadcast %cst_229 : f32 to vector<1x128xf32>
    %506 = arith.subf %505, %492 : vector<1x128xf32>
    %507 = arith.subf %506, %495 : vector<1x128xf32>
    %508 = arith.subf %507, %498 : vector<1x128xf32>
    %509 = arith.mulf %508, %489 : vector<1x128xf32>
    %510 = arith.mulf %492, %501 : vector<1x128xf32>
    %511 = arith.addf %509, %510 : vector<1x128xf32>
    %512 = arith.mulf %495, %482 : vector<1x128xf32>
    %513 = arith.addf %511, %512 : vector<1x128xf32>
    %514 = arith.mulf %498, %504 : vector<1x128xf32>
    %515 = arith.addf %513, %514 : vector<1x128xf32>
    %516 = arith.index_cast %c14_i32 : i32 to index
    %c0_230 = arith.constant 0 : index
    %c0_231 = arith.constant 0 : index
    %517 = vector.load %arg6[%516, %c0_230, %c0_231] : memref<16x1x128xf32, #tpu.memory_space<vmem>>, vector<1x1x128xf32>
    %518 = vector.shape_cast %517 : vector<1x1x128xf32> to vector<1x128xf32>
    %519 = vector.shape_cast %515 : vector<1x128xf32> to vector<1x1x128xf32>
    tpu.vector_store %arg6[%516, %c0_230, %c0_231], %519 {strides = array<i32>} : memref<16x1x128xf32, #tpu.memory_space<vmem>>, vector<1x1x128xf32>,
    %c15_i32_232 = arith.constant 15 : i32
    %520 = arith.index_cast %c15_i32_232 : i32 to index
    %c0_233 = arith.constant 0 : index
    %c0_234 = arith.constant 0 : index
    %521 = vector.load %arg2[%520, %c0_233, %c0_234] : memref<16x1x128xf32, #tpu.memory_space<vmem>>, vector<1x1x128xf32>
    %522 = vector.shape_cast %521 : vector<1x1x128xf32> to vector<1x128xf32>
    %523 = arith.index_cast %c15_i32_232 : i32 to index
    %c0_235 = arith.constant 0 : index
    %c0_236 = arith.constant 0 : index
    %524 = vector.load %arg3[%523, %c0_235, %c0_236] : memref<16x1x128xf32, #tpu.memory_space<vmem>>, vector<1x1x128xf32>
    %525 = vector.shape_cast %524 : vector<1x1x128xf32> to vector<1x128xf32>
    %526 = arith.index_cast %c15_i32_232 : i32 to index
    %c0_237 = arith.constant 0 : index
    %c0_238 = arith.constant 0 : index
    %527 = vector.load %arg4[%526, %c0_237, %c0_238] : memref<16x1x128xf32, #tpu.memory_space<vmem>>, vector<1x1x128xf32>
    %528 = vector.shape_cast %527 : vector<1x1x128xf32> to vector<1x128xf32>
    %529 = arith.index_cast %c15_i32_232 : i32 to index
    %c0_239 = arith.constant 0 : index
    %c0_240 = arith.constant 0 : index
    %530 = vector.load %arg5[%529, %c0_239, %c0_240] : memref<16x1x128xf32, #tpu.memory_space<vmem>>, vector<1x1x128xf32>
    %531 = vector.shape_cast %530 : vector<1x1x128xf32> to vector<1x128xf32>
    %c1_i32_241 = arith.constant 1 : i32
    %532 = tpu.dynamic_rotate %515 by %c1_i32_241 dim 1 : vector<1x128xf32>, i32 -> vector<1x128xf32>
    %cst_242 = arith.constant 0.000000e+00 : f32
    %533 = vector.broadcast %cst_242 : f32 to vector<1x128xf32>
    %534 = arith.select %21, %532, %533 : vector<1x128xi1>, vector<1x128xf32>
    %c127_i32_243 = arith.constant 127 : i32
    %535 = tpu.dynamic_rotate %515 by %c127_i32_243 dim 1 : vector<1x128xf32>, i32 -> vector<1x128xf32>
    %cst_244 = arith.constant 0.000000e+00 : f32
    %536 = vector.broadcast %cst_244 : f32 to vector<1x128xf32>
    %537 = arith.select %23, %535, %536 : vector<1x128xi1>, vector<1x128xf32>
    %cst_245 = arith.constant 1.000000e+00 : f32
    %538 = vector.broadcast %cst_245 : f32 to vector<1x128xf32>
    %539 = arith.subf %538, %525 : vector<1x128xf32>
    %540 = arith.subf %539, %528 : vector<1x128xf32>
    %541 = arith.subf %540, %531 : vector<1x128xf32>
    %542 = arith.mulf %541, %522 : vector<1x128xf32>
    %543 = arith.mulf %525, %534 : vector<1x128xf32>
    %544 = arith.addf %542, %543 : vector<1x128xf32>
    %545 = arith.mulf %528, %515 : vector<1x128xf32>
    %546 = arith.addf %544, %545 : vector<1x128xf32>
    %547 = arith.mulf %531, %537 : vector<1x128xf32>
    %548 = arith.addf %546, %547 : vector<1x128xf32>
    %549 = arith.index_cast %c15_i32_232 : i32 to index
    %c0_246 = arith.constant 0 : index
    %c0_247 = arith.constant 0 : index
    %550 = vector.load %arg6[%549, %c0_246, %c0_247] : memref<16x1x128xf32, #tpu.memory_space<vmem>>, vector<1x1x128xf32>
    %551 = vector.shape_cast %550 : vector<1x1x128xf32> to vector<1x128xf32>
    %552 = vector.shape_cast %548 : vector<1x128xf32> to vector<1x1x128xf32>
    tpu.vector_store %arg6[%549, %c0_246, %c0_247], %552 {strides = array<i32>} : memref<16x1x128xf32, #tpu.memory_space<vmem>>, vector<1x1x128xf32>,
    %c16_i32_248 = arith.constant 16 : i32
    %c0_249 = arith.constant 0 : index
    %c0_250 = arith.constant 0 : index
    %553 = vector.load %arg7[%c0_249, %c0_250] : memref<1x128xf32, #tpu.memory_space<vmem>>, vector<1x128xf32>
    tpu.vector_store %arg7[%c0_249, %c0_250], %548 {strides = array<i32>} : memref<1x128xf32, #tpu.memory_space<vmem>>, vector<1x128xf32>,
    return
  }
  func.func @transform_0(%arg0: i32, %arg1: i32) -> (i32, i32, i32) {
    %c0_i32 = arith.constant 0 : i32
    %c0_i32_0 = arith.constant 0 : i32
    return %arg1, %arg0, %c0_i32 : i32, i32, i32
  }
  func.func @transform_1(%arg0: i32, %arg1: i32) -> (i32, i32, i32) {
    %c0_i32 = arith.constant 0 : i32
    %c0_i32_0 = arith.constant 0 : i32
    return %arg1, %arg0, %c0_i32 : i32, i32, i32
  }
  func.func @transform_2(%arg0: i32, %arg1: i32) -> (i32, i32, i32) {
    %c0_i32 = arith.constant 0 : i32
    %c0_i32_0 = arith.constant 0 : i32
    return %arg1, %arg0, %c0_i32 : i32, i32, i32
  }
  func.func @transform_3(%arg0: i32, %arg1: i32) -> (i32, i32, i32) {
    %c0_i32 = arith.constant 0 : i32
    %c0_i32_0 = arith.constant 0 : i32
    return %arg1, %arg0, %c0_i32 : i32, i32, i32
  }
  func.func @transform_4(%arg0: i32, %arg1: i32) -> (i32, i32, i32) {
    %c0_i32 = arith.constant 0 : i32
    %c0_i32_0 = arith.constant 0 : i32
    return %arg1, %arg0, %c0_i32 : i32, i32, i32
  }
}

</mosaic_0001>

<llo_original>
// kernel: gate_recurrent_2d_noind.1
$region0: #{gate_recurrent_2d_noind.1}
  #allocation0 [shape = 'u32[]', space=smem, size = 0x4, offset = 0x4, fixed_abs, tag = 'smem constant byte address 0x4 - core index']
  #allocation1 [shape = 'u32[72,128]{1,0:T(1,128)}', space=vmem, size = 0x9000, scoped, tag = 'internal scratch']
  #allocation2 [shape = 'f32[1,128]{1,0:T(1,128)}', space=vmem, size = 0x200, scoped, tag = 'scratch operand']
  %s0 = inlined_call_operand.vmem [shape: f32[16,1,128], index: 0, kind: input, shape index: {}]
  %s1 = inlined_call_operand.vmem [shape: f32[16,1,128], index: 1, kind: input, shape index: {}]
  %s2 = inlined_call_operand.vmem [shape: f32[16,1,128], index: 2, kind: input, shape index: {}]
  %s3 = inlined_call_operand.vmem [shape: f32[16,1,128], index: 3, kind: input, shape index: {}]
  %s4 = inlined_call_operand.vmem [shape: f32[16,1,128], index: 4, kind: output, shape index: {}]
  %s5 = sld [smem:[#allocation0]]
  $region30: #{gate_recurrent_2d_noind.1} parent=0
    _
  %s7 = ssub.s32 1, %s5
  %s8 = scalar_select 0, %s7, %s5
  // Predicated region
  $region2: #{gate_recurrent_2d_noind.1} parent=0 // pred_check
    _
  $region3: #{gate_recurrent_2d_noind.1} parent=0 // pred_check_branch
    %10 = sbr.rel (0) target = $region5
  $region4: #{gate_recurrent_2d_noind.1} parent=0 // pred_region
    _
  $region5: #{gate_recurrent_2d_noind.1} parent=0 // pred_fallthru
    _
  // Predicated region
  $region6: #{gate_recurrent_2d_noind.1} parent=0 // pred_check
    _
  $region7: #{gate_recurrent_2d_noind.1} parent=0 // pred_check_branch
    %12 = sbr.rel (0) target = $region9
  $region8: #{gate_recurrent_2d_noind.1} parent=0 // pred_region
    _
  $region9: #{gate_recurrent_2d_noind.1} parent=0 // pred_fallthru
    _
  // Predicated region
  $region10: #{gate_recurrent_2d_noind.1} parent=0 // pred_check
    _
  $region11: #{gate_recurrent_2d_noind.1} parent=0 // pred_check_branch
    %14 = sbr.rel (0) target = $region13
  $region12: #{gate_recurrent_2d_noind.1} parent=0 // pred_region
    _
  $region13: #{gate_recurrent_2d_noind.1} parent=0 // pred_fallthru
    _
  // Predicated region
  $region14: #{gate_recurrent_2d_noind.1} parent=0 // pred_check
    _
  $region15: #{gate_recurrent_2d_noind.1} parent=0 // pred_check_branch
    %16 = sbr.rel (0) target = $region17
  $region16: #{gate_recurrent_2d_noind.1} parent=0 // pred_region
    _
  $region17: #{gate_recurrent_2d_noind.1} parent=0 // pred_fallthru
    _
  %p17 = scmp.eq.s32.totalorder 0, 0
  // Predicated region
  $region18: #{gate_recurrent_2d_noind.1} parent=0 // pred_check
    %p18 = pneg %p17
  $region19: #{gate_recurrent_2d_noind.1} parent=0 // pred_check_branch
    %20 = sbr.rel (%p18) target = $region21
  $region20: #{gate_recurrent_2d_noind.1} parent=0 // pred_region
    %21 = vst [vmem:[#allocation2] sm:$0x1] 0.0
  $region21: #{gate_recurrent_2d_noind.1} parent=0 // pred_fallthru
    _
  %v22 = vlaneseq
  %v23 = vand.u32 %v22, 127
  %vm24 = vcmp.lt.s32.totalorder %v23, 0
  %v25 = vsub.s32 0, %v23
  %v26 = vsel %vm24, %v25, %v23
  %v27 = vshrl.u32 %v26, 4
  %v28 = vand.u32 %v26, 15
  %v29 = vsub.s32 0, %v28
  %v30 = vsel %vm24, %v29, %v28
  %vm31 = vcmp.ne.s32.totalorder %v30, 0
  %vm32 = vcmp.lt.s32.totalorder %v30, 0
  %vm33 = vmand %vm32, %vm31
  %v34 = vadd.s32 %v30, 16
  %v35 = vsel %vm33, %v34, %v30
  %vm36 = vcmp.gt.s32.totalorder %v35, 0
  %vm37 = vcmp.lt.s32.totalorder %v35, 15
  %v38 = vld [vmem:[#allocation2] sm:$0x1]
  %v39 = vld [vmem:[%s0] sm:$0x1]
  %v40 = vld [vmem:[%s1] sm:$0x1]
  %v41 = vld [vmem:[%s2] sm:$0x1]
  %v42 = vld [vmem:[%s3] sm:$0x1]
  %43 = vrot.lane.b32.xlu0 %v38, 1
  %v44 = vpop.permute.xlu0 %43
  %v45 = vsel %vm36, %v44, 0.0
  %46 = vrot.lane.b32.xlu0 %v38, 127
  %v47 = vpop.permute.xlu0 %46
  %v48 = vsel %vm37, %v47, 0.0
  %v49 = vsub.f32 1.0, %v40
  %v50 = vsub.f32 %v49, %v41
  %v51 = vsub.f32 %v50, %v42
  %v52 = vmul.f32 %v51, %v39
  %v53 = vmul.f32 %v40, %v45
  %v54 = vadd.f32 %v52, %v53
  %v55 = vmul.f32 %v41, %v38
  %v56 = vadd.f32 %v54, %v55
  %v57 = vmul.f32 %v42, %v48
  %v58 = vadd.f32 %v56, %v57
  %59 = vst [vmem:[%s4] sm:$0x1] %v58
  %s60 = scalar_lea.vmem %s0, 1
  %v61 = vld [vmem:[%s60] sm:$0x1]
  %s62 = scalar_lea.vmem %s1, 1
  %v63 = vld [vmem:[%s62] sm:$0x1]
  %s64 = scalar_lea.vmem %s2, 1
  %v65 = vld [vmem:[%s64] sm:$0x1]
  %s66 = scalar_lea.vmem %s3, 1
  %v67 = vld [vmem:[%s66] sm:$0x1]
  %68 = vrot.lane.b32.xlu0 %v58, 1
  %v69 = vpop.permute.xlu0 %68
  %v70 = vsel %vm36, %v69, 0.0
  %71 = vrot.lane.b32.xlu0 %v58, 127
  %v72 = vpop.permute.xlu0 %71
  %v73 = vsel %vm37, %v72, 0.0
  %v74 = vsub.f32 1.0, %v63
  %v75 = vsub.f32 %v74, %v65
  %v76 = vsub.f32 %v75, %v67
  %v77 = vmul.f32 %v76, %v61
  %v78 = vmul.f32 %v63, %v70
  %v79 = vadd.f32 %v77, %v78
  %v80 = vmul.f32 %v65, %v58
  %v81 = vadd.f32 %v79, %v80
  %v82 = vmul.f32 %v67, %v73
  %v83 = vadd.f32 %v81, %v82
  %s84 = scalar_lea.vmem %s4, 1
  %85 = vst [vmem:[%s84] sm:$0x1] %v83
  %s86 = scalar_lea.vmem %s0, 2
  %v87 = vld [vmem:[%s86] sm:$0x1]
  %s88 = scalar_lea.vmem %s1, 2
  %v89 = vld [vmem:[%s88] sm:$0x1]
  %s90 = scalar_lea.vmem %s2, 2
  %v91 = vld [vmem:[%s90] sm:$0x1]
  %s92 = scalar_lea.vmem %s3, 2
  %v93 = vld [vmem:[%s92] sm:$0x1]
  %94 = vrot.lane.b32.xlu0 %v83, 1
  %v95 = vpop.permute.xlu0 %94
  %v96 = vsel %vm36, %v95, 0.0
  %97 = vrot.lane.b32.xlu0 %v83, 127
  %v98 = vpop.permute.xlu0 %97
  %v99 = vsel %vm37, %v98, 0.0
  %v100 = vsub.f32 1.0, %v89
  %v101 = vsub.f32 %v100, %v91
  %v102 = vsub.f32 %v101, %v93
  %v103 = vmul.f32 %v102, %v87
  %v104 = vmul.f32 %v89, %v96
  %v105 = vadd.f32 %v103, %v104
  %v106 = vmul.f32 %v91, %v83
  %v107 = vadd.f32 %v105, %v106
  %v108 = vmul.f32 %v93, %v99
  %v109 = vadd.f32 %v107, %v108
  %s110 = scalar_lea.vmem %s4, 2
  %111 = vst [vmem:[%s110] sm:$0x1] %v109
  %s112 = scalar_lea.vmem %s0, 3
  %v113 = vld [vmem:[%s112] sm:$0x1]
  %s114 = scalar_lea.vmem %s1, 3
  %v115 = vld [vmem:[%s114] sm:$0x1]
  %s116 = scalar_lea.vmem %s2, 3
  %v117 = vld [vmem:[%s116] sm:$0x1]
  %s118 = scalar_lea.vmem %s3, 3
  %v119 = vld [vmem:[%s118] sm:$0x1]
  %120 = vrot.lane.b32.xlu0 %v109, 1
  %v121 = vpop.permute.xlu0 %120
  %v122 = vsel %vm36, %v121, 0.0
  %123 = vrot.lane.b32.xlu0 %v109, 127
  %v124 = vpop.permute.xlu0 %123
  %v125 = vsel %vm37, %v124, 0.0
  %v126 = vsub.f32 1.0, %v115
  %v127 = vsub.f32 %v126, %v117
  %v128 = vsub.f32 %v127, %v119
  %v129 = vmul.f32 %v128, %v113
  %v130 = vmul.f32 %v115, %v122
  %v131 = vadd.f32 %v129, %v130
  %v132 = vmul.f32 %v117, %v109
  %v133 = vadd.f32 %v131, %v132
  %v134 = vmul.f32 %v119, %v125
  %v135 = vadd.f32 %v133, %v134
  %s136 = scalar_lea.vmem %s4, 3
  %137 = vst [vmem:[%s136] sm:$0x1] %v135
  %s138 = scalar_lea.vmem %s0, 4
  %v139 = vld [vmem:[%s138] sm:$0x1]
  %s140 = scalar_lea.vmem %s1, 4
  %v141 = vld [vmem:[%s140] sm:$0x1]
  %s142 = scalar_lea.vmem %s2, 4
  %v143 = vld [vmem:[%s142] sm:$0x1]
  %s144 = scalar_lea.vmem %s3, 4
  %v145 = vld [vmem:[%s144] sm:$0x1]
  %146 = vrot.lane.b32.xlu0 %v135, 1
  %v147 = vpop.permute.xlu0 %146
  %v148 = vsel %vm36, %v147, 0.0
  %149 = vrot.lane.b32.xlu0 %v135, 127
  %v150 = vpop.permute.xlu0 %149
  %v151 = vsel %vm37, %v150, 0.0
  %v152 = vsub.f32 1.0, %v141
  %v153 = vsub.f32 %v152, %v143
  %v154 = vsub.f32 %v153, %v145
  %v155 = vmul.f32 %v154, %v139
  %v156 = vmul.f32 %v141, %v148
  %v157 = vadd.f32 %v155, %v156
  %v158 = vmul.f32 %v143, %v135
  %v159 = vadd.f32 %v157, %v158
  %v160 = vmul.f32 %v145, %v151
  %v161 = vadd.f32 %v159, %v160
  %s162 = scalar_lea.vmem %s4, 4
  %163 = vst [vmem:[%s162] sm:$0x1] %v161
  %s164 = scalar_lea.vmem %s0, 5
  %v165 = vld [vmem:[%s164] sm:$0x1]
  %s166 = scalar_lea.vmem %s1, 5
  %v167 = vld [vmem:[%s166] sm:$0x1]
  %s168 = scalar_lea.vmem %s2, 5
  %v169 = vld [vmem:[%s168] sm:$0x1]
  %s170 = scalar_lea.vmem %s3, 5
  %v171 = vld [vmem:[%s170] sm:$0x1]
  %172 = vrot.lane.b32.xlu0 %v161, 1
  %v173 = vpop.permute.xlu0 %172
  %v174 = vsel %vm36, %v173, 0.0
  %175 = vrot.lane.b32.xlu0 %v161, 127
  %v176 = vpop.permute.xlu0 %175
  %v177 = vsel %vm37, %v176, 0.0
  %v178 = vsub.f32 1.0, %v167
  %v179 = vsub.f32 %v178, %v169
  %v180 = vsub.f32 %v179, %v171
  %v181 = vmul.f32 %v180, %v165
  %v182 = vmul.f32 %v167, %v174
  %v183 = vadd.f32 %v181, %v182
  %v184 = vmul.f32 %v169, %v161
  %v185 = vadd.f32 %v183, %v184
  %v186 = vmul.f32 %v171, %v177
  %v187 = vadd.f32 %v185, %v186
  %s188 = scalar_lea.vmem %s4, 5
  %189 = vst [vmem:[%s188] sm:$0x1] %v187
  %s190 = scalar_lea.vmem %s0, 6
  %v191 = vld [vmem:[%s190] sm:$0x1]
  %s192 = scalar_lea.vmem %s1, 6
  %v193 = vld [vmem:[%s192] sm:$0x1]
  %s194 = scalar_lea.vmem %s2, 6
  %v195 = vld [vmem:[%s194] sm:$0x1]
  %s196 = scalar_lea.vmem %s3, 6
  %v197 = vld [vmem:[%s196] sm:$0x1]
  %198 = vrot.lane.b32.xlu0 %v187, 1
  %v199 = vpop.permute.xlu0 %198
  %v200 = vsel %vm36, %v199, 0.0
  %201 = vrot.lane.b32.xlu0 %v187, 127
  %v202 = vpop.permute.xlu0 %201
  %v203 = vsel %vm37, %v202, 0.0
  %v204 = vsub.f32 1.0, %v193
  %v205 = vsub.f32 %v204, %v195
  %v206 = vsub.f32 %v205, %v197
  %v207 = vmul.f32 %v206, %v191
  %v208 = vmul.f32 %v193, %v200
  %v209 = vadd.f32 %v207, %v208
  %v210 = vmul.f32 %v195, %v187
  %v211 = vadd.f32 %v209, %v210
  %v212 = vmul.f32 %v197, %v203
  %v213 = vadd.f32 %v211, %v212
  %s214 = scalar_lea.vmem %s4, 6
  %215 = vst [vmem:[%s214] sm:$0x1] %v213
  %s216 = scalar_lea.vmem %s0, 7
  %v217 = vld [vmem:[%s216] sm:$0x1]
  %s218 = scalar_lea.vmem %s1, 7
  %v219 = vld [vmem:[%s218] sm:$0x1]
  %s220 = scalar_lea.vmem %s2, 7
  %v221 = vld [vmem:[%s220] sm:$0x1]
  %s222 = scalar_lea.vmem %s3, 7
  %v223 = vld [vmem:[%s222] sm:$0x1]
  %224 = vrot.lane.b32.xlu0 %v213, 1
  %v225 = vpop.permute.xlu0 %224
  %v226 = vsel %vm36, %v225, 0.0
  %227 = vrot.lane.b32.xlu0 %v213, 127
  %v228 = vpop.permute.xlu0 %227
  %v229 = vsel %vm37, %v228, 0.0
  %v230 = vsub.f32 1.0, %v219
  %v231 = vsub.f32 %v230, %v221
  %v232 = vsub.f32 %v231, %v223
  %v233 = vmul.f32 %v232, %v217
  %v234 = vmul.f32 %v219, %v226
  %v235 = vadd.f32 %v233, %v234
  %v236 = vmul.f32 %v221, %v213
  %v237 = vadd.f32 %v235, %v236
  %v238 = vmul.f32 %v223, %v229
  %v239 = vadd.f32 %v237, %v238
  %s240 = scalar_lea.vmem %s4, 7
  %241 = vst [vmem:[%s240] sm:$0x1] %v239
  %s242 = scalar_lea.vmem %s0, 8
  %v243 = vld [vmem:[%s242] sm:$0x1]
  %s244 = scalar_lea.vmem %s1, 8
  %v245 = vld [vmem:[%s244] sm:$0x1]
  %s246 = scalar_lea.vmem %s2, 8
  %v247 = vld [vmem:[%s246] sm:$0x1]
  %s248 = scalar_lea.vmem %s3, 8
  %v249 = vld [vmem:[%s248] sm:$0x1]
  %250 = vrot.lane.b32.xlu0 %v239, 1
  %v251 = vpop.permute.xlu0 %250
  %v252 = vsel %vm36, %v251, 0.0
  %253 = vrot.lane.b32.xlu0 %v239, 127
  %v254 = vpop.permute.xlu0 %253
  %v255 = vsel %vm37, %v254, 0.0
  %v256 = vsub.f32 1.0, %v245
  %v257 = vsub.f32 %v256, %v247
  %v258 = vsub.f32 %v257, %v249
  %v259 = vmul.f32 %v258, %v243
  %v260 = vmul.f32 %v245, %v252
  %v261 = vadd.f32 %v259, %v260
  %v262 = vmul.f32 %v247, %v239
  %v263 = vadd.f32 %v261, %v262
  %v264 = vmul.f32 %v249, %v255
  %v265 = vadd.f32 %v263, %v264
  %s266 = scalar_lea.vmem %s4, 8
  %267 = vst [vmem:[%s266] sm:$0x1] %v265
  %s268 = scalar_lea.vmem %s0, 9
  %v269 = vld [vmem:[%s268] sm:$0x1]
  %s270 = scalar_lea.vmem %s1, 9
  %v271 = vld [vmem:[%s270] sm:$0x1]
  %s272 = scalar_lea.vmem %s2, 9
  %v273 = vld [vmem:[%s272] sm:$0x1]
  %s274 = scalar_lea.vmem %s3, 9
  %v275 = vld [vmem:[%s274] sm:$0x1]
  %276 = vrot.lane.b32.xlu0 %v265, 1
  %v277 = vpop.permute.xlu0 %276
  %v278 = vsel %vm36, %v277, 0.0
  %279 = vrot.lane.b32.xlu0 %v265, 127
  %v280 = vpop.permute.xlu0 %279
  %v281 = vsel %vm37, %v280, 0.0
  %v282 = vsub.f32 1.0, %v271
  %v283 = vsub.f32 %v282, %v273
  %v284 = vsub.f32 %v283, %v275
  %v285 = vmul.f32 %v284, %v269
  %v286 = vmul.f32 %v271, %v278
  %v287 = vadd.f32 %v285, %v286
  %v288 = vmul.f32 %v273, %v265
  %v289 = vadd.f32 %v287, %v288
  %v290 = vmul.f32 %v275, %v281
  %v291 = vadd.f32 %v289, %v290
  %s292 = scalar_lea.vmem %s4, 9
  %293 = vst [vmem:[%s292] sm:$0x1] %v291
  %s294 = scalar_lea.vmem %s0, 10
  %v295 = vld [vmem:[%s294] sm:$0x1]
  %s296 = scalar_lea.vmem %s1, 10
  %v297 = vld [vmem:[%s296] sm:$0x1]
  %s298 = scalar_lea.vmem %s2, 10
  %v299 = vld [vmem:[%s298] sm:$0x1]
  %s300 = scalar_lea.vmem %s3, 10
  %v301 = vld [vmem:[%s300] sm:$0x1]
  %302 = vrot.lane.b32.xlu0 %v291, 1
  %v303 = vpop.permute.xlu0 %302
  %v304 = vsel %vm36, %v303, 0.0
  %305 = vrot.lane.b32.xlu0 %v291, 127
  %v306 = vpop.permute.xlu0 %305
  %v307 = vsel %vm37, %v306, 0.0
  %v308 = vsub.f32 1.0, %v297
  %v309 = vsub.f32 %v308, %v299
  %v310 = vsub.f32 %v309, %v301
  %v311 = vmul.f32 %v310, %v295
  %v312 = vmul.f32 %v297, %v304
  %v313 = vadd.f32 %v311, %v312
  %v314 = vmul.f32 %v299, %v291
  %v315 = vadd.f32 %v313, %v314
  %v316 = vmul.f32 %v301, %v307
  %v317 = vadd.f32 %v315, %v316
  %s318 = scalar_lea.vmem %s4, 10
  %319 = vst [vmem:[%s318] sm:$0x1] %v317
  %s320 = scalar_lea.vmem %s0, 11
  %v321 = vld [vmem:[%s320] sm:$0x1]
  %s322 = scalar_lea.vmem %s1, 11
  %v323 = vld [vmem:[%s322] sm:$0x1]
  %s324 = scalar_lea.vmem %s2, 11
  %v325 = vld [vmem:[%s324] sm:$0x1]
  %s326 = scalar_lea.vmem %s3, 11
  %v327 = vld [vmem:[%s326] sm:$0x1]
  %328 = vrot.lane.b32.xlu0 %v317, 1
  %v329 = vpop.permute.xlu0 %328
  %v330 = vsel %vm36, %v329, 0.0
  %331 = vrot.lane.b32.xlu0 %v317, 127
  %v332 = vpop.permute.xlu0 %331
  %v333 = vsel %vm37, %v332, 0.0
  %v334 = vsub.f32 1.0, %v323
  %v335 = vsub.f32 %v334, %v325
  %v336 = vsub.f32 %v335, %v327
  %v337 = vmul.f32 %v336, %v321
  %v338 = vmul.f32 %v323, %v330
  %v339 = vadd.f32 %v337, %v338
  %v340 = vmul.f32 %v325, %v317
  %v341 = vadd.f32 %v339, %v340
  %v342 = vmul.f32 %v327, %v333
  %v343 = vadd.f32 %v341, %v342
  %s344 = scalar_lea.vmem %s4, 11
  %345 = vst [vmem:[%s344] sm:$0x1] %v343
  %s346 = scalar_lea.vmem %s0, 12
  %v347 = vld [vmem:[%s346] sm:$0x1]
  %s348 = scalar_lea.vmem %s1, 12
  %v349 = vld [vmem:[%s348] sm:$0x1]
  %s350 = scalar_lea.vmem %s2, 12
  %v351 = vld [vmem:[%s350] sm:$0x1]
  %s352 = scalar_lea.vmem %s3, 12
  %v353 = vld [vmem:[%s352] sm:$0x1]
  %354 = vrot.lane.b32.xlu0 %v343, 1
  %v355 = vpop.permute.xlu0 %354
  %v356 = vsel %vm36, %v355, 0.0
  %357 = vrot.lane.b32.xlu0 %v343, 127
  %v358 = vpop.permute.xlu0 %357
  %v359 = vsel %vm37, %v358, 0.0
  %v360 = vsub.f32 1.0, %v349
  %v361 = vsub.f32 %v360, %v351
  %v362 = vsub.f32 %v361, %v353
  %v363 = vmul.f32 %v362, %v347
  %v364 = vmul.f32 %v349, %v356
  %v365 = vadd.f32 %v363, %v364
  %v366 = vmul.f32 %v351, %v343
  %v367 = vadd.f32 %v365, %v366
  %v368 = vmul.f32 %v353, %v359
  %v369 = vadd.f32 %v367, %v368
  %s370 = scalar_lea.vmem %s4, 12
  %371 = vst [vmem:[%s370] sm:$0x1] %v369
  %s372 = scalar_lea.vmem %s0, 13
  %v373 = vld [vmem:[%s372] sm:$0x1]
  %s374 = scalar_lea.vmem %s1, 13
  %v375 = vld [vmem:[%s374] sm:$0x1]
  %s376 = scalar_lea.vmem %s2, 13
  %v377 = vld [vmem:[%s376] sm:$0x1]
  %s378 = scalar_lea.vmem %s3, 13
  %v379 = vld [vmem:[%s378] sm:$0x1]
  %380 = vrot.lane.b32.xlu0 %v369, 1
  %v381 = vpop.permute.xlu0 %380
  %v382 = vsel %vm36, %v381, 0.0
  %383 = vrot.lane.b32.xlu0 %v369, 127
  %v384 = vpop.permute.xlu0 %383
  %v385 = vsel %vm37, %v384, 0.0
  %v386 = vsub.f32 1.0, %v375
  %v387 = vsub.f32 %v386, %v377
  %v388 = vsub.f32 %v387, %v379
  %v389 = vmul.f32 %v388, %v373
  %v390 = vmul.f32 %v375, %v382
  %v391 = vadd.f32 %v389, %v390
  %v392 = vmul.f32 %v377, %v369
  %v393 = vadd.f32 %v391, %v392
  %v394 = vmul.f32 %v379, %v385
  %v395 = vadd.f32 %v393, %v394
  %s396 = scalar_lea.vmem %s4, 13
  %397 = vst [vmem:[%s396] sm:$0x1] %v395
  %s398 = scalar_lea.vmem %s0, 14
  %v399 = vld [vmem:[%s398] sm:$0x1]
  %s400 = scalar_lea.vmem %s1, 14
  %v401 = vld [vmem:[%s400] sm:$0x1]
  %s402 = scalar_lea.vmem %s2, 14
  %v403 = vld [vmem:[%s402] sm:$0x1]
  %s404 = scalar_lea.vmem %s3, 14
  %v405 = vld [vmem:[%s404] sm:$0x1]
  %406 = vrot.lane.b32.xlu0 %v395, 1
  %v407 = vpop.permute.xlu0 %406
  %v408 = vsel %vm36, %v407, 0.0
  %409 = vrot.lane.b32.xlu0 %v395, 127
  %v410 = vpop.permute.xlu0 %409
  %v411 = vsel %vm37, %v410, 0.0
  %v412 = vsub.f32 1.0, %v401
  %v413 = vsub.f32 %v412, %v403
  %v414 = vsub.f32 %v413, %v405
  %v415 = vmul.f32 %v414, %v399
  %v416 = vmul.f32 %v401, %v408
  %v417 = vadd.f32 %v415, %v416
  %v418 = vmul.f32 %v403, %v395
  %v419 = vadd.f32 %v417, %v418
  %v420 = vmul.f32 %v405, %v411
  %v421 = vadd.f32 %v419, %v420
  %s422 = scalar_lea.vmem %s4, 14
  %423 = vst [vmem:[%s422] sm:$0x1] %v421
  %s424 = scalar_lea.vmem %s0, 15
  %v425 = vld [vmem:[%s424] sm:$0x1]
  %s426 = scalar_lea.vmem %s1, 15
  %v427 = vld [vmem:[%s426] sm:$0x1]
  %s428 = scalar_lea.vmem %s2, 15
  %v429 = vld [vmem:[%s428] sm:$0x1]
  %s430 = scalar_lea.vmem %s3, 15
  %v431 = vld [vmem:[%s430] sm:$0x1]
  %432 = vrot.lane.b32.xlu0 %v421, 1
  %v433 = vpop.permute.xlu0 %432
  %v434 = vsel %vm36, %v433, 0.0
  %435 = vrot.lane.b32.xlu0 %v421, 127
  %v436 = vpop.permute.xlu0 %435
  %v437 = vsel %vm37, %v436, 0.0
  %v438 = vsub.f32 1.0, %v427
  %v439 = vsub.f32 %v438, %v429
  %v440 = vsub.f32 %v439, %v431
  %v441 = vmul.f32 %v440, %v425
  %v442 = vmul.f32 %v427, %v434
  %v443 = vadd.f32 %v441, %v442
  %v444 = vmul.f32 %v429, %v421
  %v445 = vadd.f32 %v443, %v444
  %v446 = vmul.f32 %v431, %v437
  %v447 = vadd.f32 %v445, %v446
  %s448 = scalar_lea.vmem %s4, 15
  %449 = vst [vmem:[%s448] sm:$0x1] %v447
  %450 = vst [vmem:[#allocation2] sm:$0x1] %v447
  // Predicated region
  $region22: #{gate_recurrent_2d_noind.1} parent=0 // pred_check
    _
  $region23: #{gate_recurrent_2d_noind.1} parent=0 // pred_check_branch
    %452 = sbr.rel (0) target = $region25
  $region24: #{gate_recurrent_2d_noind.1} parent=0 // pred_region
    _
  $region25: #{gate_recurrent_2d_noind.1} parent=0 // pred_fallthru
    _
  // Predicated region
  $region26: #{gate_recurrent_2d_noind.1} parent=0 // pred_check
    _
  $region27: #{gate_recurrent_2d_noind.1} parent=0 // pred_check_branch
    %454 = sbr.rel (0) target = $region29
  $region28: #{gate_recurrent_2d_noind.1} parent=0 // pred_region
    _
  $region29: #{gate_recurrent_2d_noind.1} parent=0 // pred_fallthru
    _

</llo_original>
